<compile_context>
chip_gen: v6e
topology: v6e:2x2x1
jax: 0.10.0
libtpu: 0.0.40
codegen_flags: <defaults>
</compile_context>

<pallas_src>
import jax
import jax.numpy as jnp
from jax import lax
from jax.experimental import pallas as pl
from jax.experimental.pallas import tpu as pltpu

EPS = 1e-5
TM = 256  # fixed M-tile: same kernel shapes across block configs, well under VMEM


def _round_up(x, m):
    return (x + m - 1) // m * m


# ----------------------------- Pallas kernels ------------------------------ #

def matmul_stats_kernel(p_ref, w_ref, y_ref, stats_ref):
    """y = p @ w (bf16 in, f32 acc); also emit per-tile column sum / sumsq.

    Stats are computed from the values actually written to y_ref so the later
    normalization is exactly consistent with the stored activations.
    """
    acc = jnp.dot(p_ref[...], w_ref[...], preferred_element_type=jnp.float32)
    y = acc.astype(y_ref.dtype)
    y_ref[...] = y
    yf = y.astype(jnp.float32)
    s = jnp.sum(yf, axis=0, keepdims=True)        # (1, C)
    ss = jnp.sum(yf * yf, axis=0, keepdims=True)  # (1, C)
    row = lax.broadcasted_iota(jnp.int32, (8, yf.shape[1]), 0)
    stats_ref[...] = jnp.where(row == 0, s, 0.0) + jnp.where(row == 1, ss, 0.0)


def bn_relu_kernel(y_ref, scale_ref, bias_ref, o_ref):
    """o = relu(y * scale + bias); scale/bias fold gamma*rsqrt(var+eps)."""
    o_ref[...] = jnp.maximum(
        y_ref[...].astype(jnp.float32) * scale_ref[...] + bias_ref[...],
        0.0).astype(o_ref.dtype)


def bn_relu_add_kernel(y_ref, scale_ref, bias_ref, sc_ref, o_ref):
    """o = relu(y * scale + bias) + shortcut   (identity shortcut: VPU add)."""
    act = jnp.maximum(
        y_ref[...].astype(jnp.float32) * scale_ref[...] + bias_ref[...], 0.0)
    o_ref[...] = (act + sc_ref[...]).astype(o_ref.dtype)


def bn_relu_add_proj_kernel(y_ref, scale_ref, bias_ref, sp_ref, sw_ref, o_ref):
    """o = relu(y * scale + bias) + (shortcut_patches @ shortcut_w)."""
    act = jnp.maximum(
        y_ref[...].astype(jnp.float32) * scale_ref[...] + bias_ref[...], 0.0)
    sc = jnp.dot(sp_ref[...], sw_ref[...], preferred_element_type=jnp.float32)
    o_ref[...] = (act + sc).astype(o_ref.dtype)


# --------------------------- pallas_call wrappers --------------------------- #

def _conv_matmul_stats(p, w_mat, tm, out_dtype):
    """p: (M_pad, K) bf16, w_mat: (K, C_pad) bf16.

    Returns y (out_dtype), per-channel col_sum and col_sumsq (f32).
    """
    m_pad, k = p.shape
    c_pad = w_mat.shape[1]
    n_tiles = m_pad // tm
    y_bytes = m_pad * c_pad * jnp.dtype(out_dtype).itemsize
    cost = pl.CostEstimate(
        flops=2 * m_pad * k * c_pad, transcendentals=0,
        bytes_accessed=p.size * 2 + w_mat.size * 2 + y_bytes)
    y, partial = pl.pallas_call(
        matmul_stats_kernel,
        grid=(n_tiles,),
        in_specs=[pl.BlockSpec((tm, k), lambda i: (i, 0)),
                  pl.BlockSpec((k, c_pad), lambda i: (0, 0))],
        out_specs=(pl.BlockSpec((tm, c_pad), lambda i: (i, 0)),
                   pl.BlockSpec((8, c_pad), lambda i: (i, 0))),
        out_shape=(jax.ShapeDtypeStruct((m_pad, c_pad), out_dtype),
                   jax.ShapeDtypeStruct((n_tiles * 8, c_pad), jnp.float32)),
        compiler_params=pltpu.CompilerParams(dimension_semantics=("parallel",)),
        cost_estimate=cost,
    )(p, w_mat)
    part = partial.reshape(n_tiles, 8, c_pad)
    return y, jnp.sum(part[:, 0, :], axis=0), jnp.sum(part[:, 1, :], axis=0)


def _bn_scale_bias(col_sum, col_sumsq, m_real, gamma, beta, c_pad):
    """Tiny (1, C) finalize math in plain JAX (f32, biased variance)."""
    c_out = gamma.shape[0]
    mean = col_sum / m_real
    var = jnp.maximum(col_sumsq / m_real - mean * mean, 0.0)
    g = jnp.pad(gamma.astype(jnp.float32), (0, c_pad - c_out))
    b = jnp.pad(beta.astype(jnp.float32), (0, c_pad - c_out))
    scale = g * lax.rsqrt(var + EPS)
    bias = b - mean * scale
    return scale.reshape(1, c_pad), bias.reshape(1, c_pad)


def _bn_relu(y, scale, bias, tm, out_dtype):
    m_pad, c_pad = y.shape
    n_tiles = m_pad // tm
    return pl.pallas_call(
        bn_relu_kernel,
        grid=(n_tiles,),
        in_specs=[pl.BlockSpec((tm, c_pad), lambda i: (i, 0)),
                  pl.BlockSpec((1, c_pad), lambda i: (0, 0)),
                  pl.BlockSpec((1, c_pad), lambda i: (0, 0))],
        out_specs=pl.BlockSpec((tm, c_pad), lambda i: (i, 0)),
        out_shape=jax.ShapeDtypeStruct((m_pad, c_pad), out_dtype),
        compiler_params=pltpu.CompilerParams(dimension_semantics=("parallel",)),
    )(y, scale, bias)


def _bn_relu_add(y, scale, bias, sc, tm):
    m_pad, c_pad = y.shape
    n_tiles = m_pad // tm
    return pl.pallas_call(
        bn_relu_add_kernel,
        grid=(n_tiles,),
        in_specs=[pl.BlockSpec((tm, c_pad), lambda i: (i, 0)),
                  pl.BlockSpec((1, c_pad), lambda i: (0, 0)),
                  pl.BlockSpec((1, c_pad), lambda i: (0, 0)),
                  pl.BlockSpec((tm, c_pad), lambda i: (i, 0))],
        out_specs=pl.BlockSpec((tm, c_pad), lambda i: (i, 0)),
        out_shape=jax.ShapeDtypeStruct((m_pad, c_pad), jnp.float32),
        compiler_params=pltpu.CompilerParams(dimension_semantics=("parallel",)),
    )(y, scale, bias, sc)


def _bn_relu_add_proj(y, scale, bias, sp, sw, tm):
    m_pad, c_pad = y.shape
    k_sc = sp.shape[1]
    n_tiles = m_pad // tm
    return pl.pallas_call(
        bn_relu_add_proj_kernel,
        grid=(n_tiles,),
        in_specs=[pl.BlockSpec((tm, c_pad), lambda i: (i, 0)),
                  pl.BlockSpec((1, c_pad), lambda i: (0, 0)),
                  pl.BlockSpec((1, c_pad), lambda i: (0, 0)),
                  pl.BlockSpec((tm, k_sc), lambda i: (i, 0)),
                  pl.BlockSpec((k_sc, c_pad), lambda i: (0, 0))],
        out_specs=pl.BlockSpec((tm, c_pad), lambda i: (i, 0)),
        out_shape=jax.ShapeDtypeStruct((m_pad, c_pad), jnp.float32),
        compiler_params=pltpu.CompilerParams(dimension_semantics=("parallel",)),
    )(y, scale, bias, sp, sw)


# ------------------------------ JAX glue code ------------------------------ #

def im2col(x_nhwc, kh, kw, stride, padding):
    """Extract conv patches. Returns ((M, kh*kw*C), (N, Ho, Wo))."""
    n, h, w, c = x_nhwc.shape
    xp = jnp.pad(x_nhwc, ((0, 0), (padding, padding), (padding, padding), (0, 0)))
    ho = (h + 2 * padding - kh) // stride + 1
    wo = (w + 2 * padding - kw) // stride + 1
    cols = []
    for i in range(kh):
        for j in range(kw):
            cols.append(xp[:, i:i + stride * ho:stride, j:j + stride * wo:stride, :])
    patches = jnp.stack(cols, axis=3)  # (n, ho, wo, kh*kw, c)
    return patches.reshape(n * ho * wo, kh * kw * c), (n, ho, wo)


def _oihw_to_mat(w_oihw, c_pad):
    c_out = w_oihw.shape[0]
    m = jnp.transpose(w_oihw, (2, 3, 1, 0)).reshape(-1, c_out)
    return jnp.pad(m, ((0, 0), (0, c_pad - c_out))).astype(jnp.bfloat16)


def preact_block_forward(x_nchw, params, stride):
    x = jnp.transpose(x_nchw, (0, 2, 3, 1)).astype(jnp.float32)  # NCHW -> NHWC
    n, h, w, c_in = x.shape
    c_out = params["conv1_w"].shape[0]
    c_pad = _round_up(c_out, 128)     # lane-dense (>=128) output channels
    x_bf = x.astype(jnp.bfloat16)     # cast before im2col: halves patch traffic

    # ---- conv1 (3x3, stride, pad=1): bf16 MXU matmul + BN partial stats ----
    # TODO(synk): fuse 3x3 patch extraction into the matmul kernel (9 per-tap
    # matmuls over an NHWC row tile with halo) to remove the 9x im2col HBM
    # blow-up; for now patches are built in bf16 to keep that traffic halved.
    p1, (_, ho, wo) = im2col(x_bf, 3, 3, stride, 1)
    m_real = n * ho * wo
    m_pad = _round_up(m_real, TM)
    p1 = jnp.pad(p1, ((0, m_pad - m_real), (0, 0)))
    w1 = _oihw_to_mat(params["conv1_w"], c_pad)

    y1, s1, ss1 = _conv_matmul_stats(p1, w1, TM, jnp.bfloat16)  # bf16 intermediate
    scale1, bias1 = _bn_scale_bias(s1, ss1, m_real,
                                   params["bn1_gamma"], params["bn1_beta"], c_pad)
    h1 = _bn_relu(y1, scale1, bias1, TM, jnp.bfloat16)          # bf16 feeds conv2
    h1_img = h1[:m_real, :c_out].reshape(n, ho, wo, c_out)

    # ---- conv2 (3x3, stride=1, pad=1) ----
    p2, _ = im2col(h1_img, 3, 3, 1, 1)
    p2 = jnp.pad(p2, ((0, m_pad - m_real), (0, 0)))             # already bf16
    w2 = _oihw_to_mat(params["conv2_w"], c_pad)
    y2, s2, ss2 = _conv_matmul_stats(p2, w2, TM, jnp.float32)   # f32 for finalize
    scale2, bias2 = _bn_scale_bias(s2, ss2, m_real,
                                   params["bn2_gamma"], params["bn2_beta"], c_pad)

    # ---- finalize: bn2 + relu + residual add ----
    if stride != 1 or c_in != c_out:
        sp, _ = im2col(x_bf, 1, 1, stride, 0)                   # 1x1 strided patches
        sp = jnp.pad(sp, ((0, m_pad - m_real), (0, 0)))
        wsc = _oihw_to_mat(params["shortcut_w"], c_pad)
        out = _bn_relu_add_proj(y2, scale2, bias2, sp, wsc, TM)
    else:
        sc = jnp.pad(x.reshape(m_real, c_in),
                     ((0, m_pad - m_real), (0, c_pad - c_in)))  # f32, VPU add
        out = _bn_relu_add(y2, scale2, bias2, sc, TM)

    out_img = out[:m_real, :c_out].reshape(n, ho, wo, c_out)
    return jnp.transpose(out_img, (0, 3, 1, 2))                 # back to NCHW


# ------------------------- pure-JAX reference check ------------------------ #

def ref_forward(x, params, stride):
    def conv(xx, ww, s, p):
        return lax.conv_general_dilated(
            xx, ww, window_strides=(s, s), padding=[(p, p), (p, p)],
            dimension_numbers=("NCHW", "OIHW", "NCHW"))

    def bn(xx, gamma, beta):
        mean = jnp.mean(xx, axis=(0, 2, 3), keepdims=True)
        var = jnp.mean((xx - mean) ** 2, axis=(0, 2, 3), keepdims=True)
        xhat = (xx - mean) / jnp.sqrt(var + EPS)
        return xhat * gamma.reshape(1, -1, 1, 1) + beta.reshape(1, -1, 1, 1)

    out = jax.nn.relu(bn(conv(x, params["conv1_w"], stride, 1),
                         params["bn1_gamma"], params["bn1_beta"]))
    out = jax.nn.relu(bn(conv(out, params["conv2_w"], 1, 1),
                         params["bn2_gamma"], params["bn2_beta"]))
    c_in = x.shape[1]
    c_out = params["conv1_w"].shape[0]
    if stride != 1 or c_in != c_out:
        sc = conv(x, params["shortcut_w"], stride, 0)
    else:
        sc = x
    return out + sc


def make_params(key, c_in, c_out, stride):
    ks = jax.random.split(key, 5)
    params = {
        "conv1_w": 0.1 * jax.random.normal(ks[0], (c_out, c_in, 3, 3), jnp.float32),
        "conv2_w": 0.1 * jax.random.normal(ks[1], (c_out, c_out, 3, 3), jnp.float32),
        "bn1_gamma": 1.0 + 0.1 * jax.random.normal(ks[2], (c_out,), jnp.float32),
        "bn1_beta": 0.1 * jax.random.normal(ks[2], (c_out,), jnp.float32),
        "bn2_gamma": 1.0 + 0.1 * jax.random.normal(ks[3], (c_out,), jnp.float32),
        "bn2_beta": 0.1 * jax.random.normal(ks[3], (c_out,), jnp.float32),
    }
    if stride != 1 or c_in != c_out:
        params["shortcut_w"] = 0.1 * jax.random.normal(
            ks[4], (c_out, c_in, 1, 1), jnp.float32)
    return params


if __name__ == "__main__":
    key = jax.random.PRNGKey(0)
    fwd = jax.jit(preact_block_forward, static_argnums=(2,))

    # Config 1: projection shortcut (in=4 -> out=8, stride=2), x: (2, 4, 16, 16)
    k1, k2, k3, k4 = jax.random.split(key, 4)
    x1 = jax.random.normal(k1, (2, 4, 16, 16), jnp.float32)
    p1 = make_params(k2, 4, 8, 2)
    y1 = jax.block_until_ready(fwd(x1, p1, 2))
    r1 = ref_forward(x1, p1, 2)
    assert y1.shape == (2, 8, 8, 8), y1.shape
    assert jnp.allclose(y1, r1, rtol=3e-2, atol=3e-2), \
        float(jnp.max(jnp.abs(y1 - r1)))

    # Config 2: identity shortcut (in=out=8, stride=1), x: (2, 8, 16, 16)
    x2 = jax.random.normal(k3, (2, 8, 16, 16), jnp.float32)
    p2 = make_params(k4, 8, 8, 1)
    y2 = jax.block_until_ready(fwd(x2, p2, 1))
    r2 = ref_forward(x2, p2, 1)
    assert y2.shape == (2, 8, 16, 16), y2.shape
    assert jnp.allclose(y2, r2, rtol=3e-2, atol=3e-2), \
        float(jnp.max(jnp.abs(y2 - r2)))

    print("KERNEL_OK")
</pallas_src>

<mosaic_0001>
module attributes {stable_mosaic.version = 11 : i64} {
  func.func @matmul_stats_kernel(%arg0: i32, %arg1: memref<256x36xbf16, #tpu.memory_space<vmem>>, %arg2: memref<36x128xbf16, #tpu.memory_space<vmem>>, %arg3: memref<256x128xbf16, #tpu.memory_space<vmem>>, %arg4: memref<8x128xf32, #tpu.memory_space<vmem>>) attributes {dimension_semantics = [#tpu.dimension_semantics<parallel>], iteration_bounds = array<i64: 1>, scalar_prefetch = 0 : i64, scratch_operands = 0 : i64, tpu.core_type = #tpu.core_type<tc>, window_params = [{transform_indices = @transform_0, window_bounds = array<i64: 256, 36>}, {pipeline_mode = #tpu.pipeline_mode<synchronous>, transform_indices = @transform_1, window_bounds = array<i64: 36, 128>}, {transform_indices = @transform_2, window_bounds = array<i64: 256, 128>}, {transform_indices = @transform_3, window_bounds = array<i64: 8, 128>}]} {
    %c0 = arith.constant 0 : index
    %c0_0 = arith.constant 0 : index
    %0 = vector.load %arg1[%c0, %c0_0] : memref<256x36xbf16, #tpu.memory_space<vmem>>, vector<256x36xbf16>
    %c0_1 = arith.constant 0 : index
    %c0_2 = arith.constant 0 : index
    %1 = vector.load %arg2[%c0_1, %c0_2] : memref<36x128xbf16, #tpu.memory_space<vmem>>, vector<36x128xbf16>
    %cst = arith.constant dense<0.000000e+00> : vector<256x128xf32>
    %2 = tpu.matmul %0, %1, %cst {dimension_numbers = #tpu.dot_dimension_numbers<[1], [0], [0], [1], [0, 0, 1, 1], [], []>} : vector<256x36xbf16>, vector<36x128xbf16>, vector<256x128xf32> -> vector<256x128xf32>
    %3 = arith.truncf %2 : vector<256x128xf32> to vector<256x128xbf16>
    %c0_3 = arith.constant 0 : index
    %c0_4 = arith.constant 0 : index
    %4 = vector.load %arg3[%c0_3, %c0_4] : memref<256x128xbf16, #tpu.memory_space<vmem>>, vector<256x128xbf16>
    tpu.vector_store %arg3[%c0_3, %c0_4], %3 {strides = array<i32>} : memref<256x128xbf16, #tpu.memory_space<vmem>>, vector<256x128xbf16>,
    %5 = arith.extf %3 : vector<256x128xbf16> to vector<256x128xf32>
    %cst_5 = arith.constant dense<0.000000e+00> : vector<128xf32>
    %6 = vector.multi_reduction <add>, %5, %cst_5 [0] : vector<256x128xf32> to vector<128xf32>
    %7 = vector.shape_cast %6 : vector<128xf32> to vector<1x128xf32>
    %8 = arith.mulf %5, %5 : vector<256x128xf32>
    %cst_6 = arith.constant dense<0.000000e+00> : vector<128xf32>
    %9 = vector.multi_reduction <add>, %8, %cst_6 [0] : vector<256x128xf32> to vector<128xf32>
    %10 = vector.shape_cast %9 : vector<128xf32> to vector<1x128xf32>
    %11 = tpu.iota {dimensions = array<i32: 0>} : vector<8x128xi32>
    %c0_i32 = arith.constant 0 : i32
    %12 = vector.broadcast %c0_i32 : i32 to vector<8x128xi32>
    %13 = arith.cmpi eq, %11, %12 : vector<8x128xi32>
    %cst_7 = arith.constant 0.000000e+00 : f32
    %14 = vector.shape_cast %7 : vector<1x128xf32> to vector<1x128xf32>
    %15 = vector.broadcast %14 : vector<1x128xf32> to vector<8x128xf32>
    %16 = vector.broadcast %cst_7 : f32 to vector<8x128xf32>
    %17 = arith.select %13, %15, %16 : vector<8x128xi1>, vector<8x128xf32>
    %c1_i32 = arith.constant 1 : i32
    %18 = vector.broadcast %c1_i32 : i32 to vector<8x128xi32>
    %19 = arith.cmpi eq, %11, %18 : vector<8x128xi32>
    %cst_8 = arith.constant 0.000000e+00 : f32
    %20 = vector.shape_cast %10 : vector<1x128xf32> to vector<1x128xf32>
    %21 = vector.broadcast %20 : vector<1x128xf32> to vector<8x128xf32>
    %22 = vector.broadcast %cst_8 : f32 to vector<8x128xf32>
    %23 = arith.select %19, %21, %22 : vector<8x128xi1>, vector<8x128xf32>
    %24 = arith.addf %17, %23 : vector<8x128xf32>
    %c0_9 = arith.constant 0 : index
    %c0_10 = arith.constant 0 : index
    %25 = vector.load %arg4[%c0_9, %c0_10] : memref<8x128xf32, #tpu.memory_space<vmem>>, vector<8x128xf32>
    tpu.vector_store %arg4[%c0_9, %c0_10], %24 {strides = array<i32>} : memref<8x128xf32, #tpu.memory_space<vmem>>, vector<8x128xf32>,
    return
  }
  func.func @transform_0(%arg0: i32) -> (i32, i32) {
    %c0_i32 = arith.constant 0 : i32
    %c0_i32_0 = arith.constant 0 : i32
    return %arg0, %c0_i32 : i32, i32
  }
  func.func @transform_1(%arg0: i32) -> (i32, i32) {
    %c0_i32 = arith.constant 0 : i32
    %c0_i32_0 = arith.constant 0 : i32
    %c0_i32_1 = arith.constant 0 : i32
    return %c0_i32, %c0_i32_0 : i32, i32
  }
  func.func @transform_2(%arg0: i32) -> (i32, i32) {
    %c0_i32 = arith.constant 0 : i32
    %c0_i32_0 = arith.constant 0 : i32
    return %arg0, %c0_i32 : i32, i32
  }
  func.func @transform_3(%arg0: i32) -> (i32, i32) {
    %c0_i32 = arith.constant 0 : i32
    %c0_i32_0 = arith.constant 0 : i32
    return %arg0, %c0_i32 : i32, i32
  }
}

module attributes {stable_mosaic.version = 11 : i64} {
  func.func @bn_relu_kernel(%arg0: i32, %arg1: memref<256x128xbf16, #tpu.memory_space<vmem>>, %arg2: memref<1x128xf32, #tpu.memory_space<vmem>>, %arg3: memref<1x128xf32, #tpu.memory_space<vmem>>, %arg4: memref<256x128xbf16, #tpu.memory_space<vmem>>) attributes {dimension_semantics = [#tpu.dimension_semantics<parallel>], iteration_bounds = array<i64: 1>, scalar_prefetch = 0 : i64, scratch_operands = 0 : i64, tpu.core_type = #tpu.core_type<tc>, window_params = [{transform_indices = @transform_0, window_bounds = array<i64: 256, 128>}, {pipeline_mode = #tpu.pipeline_mode<synchronous>, transform_indices = @transform_1, window_bounds = array<i64: 1, 128>}, {pipeline_mode = #tpu.pipeline_mode<synchronous>, transform_indices = @transform_2, window_bounds = array<i64: 1, 128>}, {transform_indices = @transform_3, window_bounds = array<i64: 256, 128>}]} {
    %c0 = arith.constant 0 : index
    %c0_0 = arith.constant 0 : index
    %0 = vector.load %arg1[%c0, %c0_0] : memref<256x128xbf16, #tpu.memory_space<vmem>>, vector<256x128xbf16>
    %1 = arith.extf %0 : vector<256x128xbf16> to vector<256x128xf32>
    %c0_1 = arith.constant 0 : index
    %c0_2 = arith.constant 0 : index
    %2 = vector.load %arg2[%c0_1, %c0_2] : memref<1x128xf32, #tpu.memory_space<vmem>>, vector<1x128xf32>
    %3 = vector.broadcast %2 : vector<1x128xf32> to vector<256x128xf32>
    %4 = arith.mulf %1, %3 : vector<256x128xf32>
    %c0_3 = arith.constant 0 : index
    %c0_4 = arith.constant 0 : index
    %5 = vector.load %arg3[%c0_3, %c0_4] : memref<1x128xf32, #tpu.memory_space<vmem>>, vector<1x128xf32>
    %6 = vector.broadcast %5 : vector<1x128xf32> to vector<256x128xf32>
    %7 = arith.addf %4, %6 : vector<256x128xf32>
    %cst = arith.constant 0.000000e+00 : f32
    %8 = vector.broadcast %cst : f32 to vector<256x128xf32>
    %9 = arith.maximumf %7, %8 : vector<256x128xf32>
    %10 = arith.truncf %9 : vector<256x128xf32> to vector<256x128xbf16>
    %c0_5 = arith.constant 0 : index
    %c0_6 = arith.constant 0 : index
    %11 = vector.load %arg4[%c0_5, %c0_6] : memref<256x128xbf16, #tpu.memory_space<vmem>>, vector<256x128xbf16>
    tpu.vector_store %arg4[%c0_5, %c0_6], %10 {strides = array<i32>} : memref<256x128xbf16, #tpu.memory_space<vmem>>, vector<256x128xbf16>,
    return
  }
  func.func @transform_0(%arg0: i32) -> (i32, i32) {
    %c0_i32 = arith.constant 0 : i32
    %c0_i32_0 = arith.constant 0 : i32
    return %arg0, %c0_i32 : i32, i32
  }
  func.func @transform_1(%arg0: i32) -> (i32, i32) {
    %c0_i32 = arith.constant 0 : i32
    %c0_i32_0 = arith.constant 0 : i32
    %c0_i32_1 = arith.constant 0 : i32
    return %c0_i32, %c0_i32_0 : i32, i32
  }
  func.func @transform_2(%arg0: i32) -> (i32, i32) {
    %c0_i32 = arith.constant 0 : i32
    %c0_i32_0 = arith.constant 0 : i32
    %c0_i32_1 = arith.constant 0 : i32
    return %c0_i32, %c0_i32_0 : i32, i32
  }
  func.func @transform_3(%arg0: i32) -> (i32, i32) {
    %c0_i32 = arith.constant 0 : i32
    %c0_i32_0 = arith.constant 0 : i32
    return %arg0, %c0_i32 : i32, i32
  }
}

module attributes {stable_mosaic.version = 11 : i64} {
  func.func @matmul_stats_kernel(%arg0: i32, %arg1: memref<256x72xbf16, #tpu.memory_space<vmem>>, %arg2: memref<72x128xbf16, #tpu.memory_space<vmem>>, %arg3: memref<256x128xf32, #tpu.memory_space<vmem>>, %arg4: memref<8x128xf32, #tpu.memory_space<vmem>>) attributes {dimension_semantics = [#tpu.dimension_semantics<parallel>], iteration_bounds = array<i64: 1>, scalar_prefetch = 0 : i64, scratch_operands = 0 : i64, tpu.core_type = #tpu.core_type<tc>, window_params = [{transform_indices = @transform_0, window_bounds = array<i64: 256, 72>}, {pipeline_mode = #tpu.pipeline_mode<synchronous>, transform_indices = @transform_1, window_bounds = array<i64: 72, 128>}, {transform_indices = @transform_2, window_bounds = array<i64: 256, 128>}, {transform_indices = @transform_3, window_bounds = array<i64: 8, 128>}]} {
    %c0 = arith.constant 0 : index
    %c0_0 = arith.constant 0 : index
    %0 = vector.load %arg1[%c0, %c0_0] : memref<256x72xbf16, #tpu.memory_space<vmem>>, vector<256x72xbf16>
    %c0_1 = arith.constant 0 : index
    %c0_2 = arith.constant 0 : index
    %1 = vector.load %arg2[%c0_1, %c0_2] : memref<72x128xbf16, #tpu.memory_space<vmem>>, vector<72x128xbf16>
    %cst = arith.constant dense<0.000000e+00> : vector<256x128xf32>
    %2 = tpu.matmul %0, %1, %cst {dimension_numbers = #tpu.dot_dimension_numbers<[1], [0], [0], [1], [0, 0, 1, 1], [], []>} : vector<256x72xbf16>, vector<72x128xbf16>, vector<256x128xf32> -> vector<256x128xf32>
    %c0_3 = arith.constant 0 : index
    %c0_4 = arith.constant 0 : index
    %3 = vector.load %arg3[%c0_3, %c0_4] : memref<256x128xf32, #tpu.memory_space<vmem>>, vector<256x128xf32>
    tpu.vector_store %arg3[%c0_3, %c0_4], %2 {strides = array<i32>} : memref<256x128xf32, #tpu.memory_space<vmem>>, vector<256x128xf32>,
    %cst_5 = arith.constant dense<0.000000e+00> : vector<128xf32>
    %4 = vector.multi_reduction <add>, %2, %cst_5 [0] : vector<256x128xf32> to vector<128xf32>
    %5 = vector.shape_cast %4 : vector<128xf32> to vector<1x128xf32>
    %6 = arith.mulf %2, %2 : vector<256x128xf32>
    %cst_6 = arith.constant dense<0.000000e+00> : vector<128xf32>
    %7 = vector.multi_reduction <add>, %6, %cst_6 [0] : vector<256x128xf32> to vector<128xf32>
    %8 = vector.shape_cast %7 : vector<128xf32> to vector<1x128xf32>
    %9 = tpu.iota {dimensions = array<i32: 0>} : vector<8x128xi32>
    %c0_i32 = arith.constant 0 : i32
    %10 = vector.broadcast %c0_i32 : i32 to vector<8x128xi32>
    %11 = arith.cmpi eq, %9, %10 : vector<8x128xi32>
    %cst_7 = arith.constant 0.000000e+00 : f32
    %12 = vector.shape_cast %5 : vector<1x128xf32> to vector<1x128xf32>
    %13 = vector.broadcast %12 : vector<1x128xf32> to vector<8x128xf32>
    %14 = vector.broadcast %cst_7 : f32 to vector<8x128xf32>
    %15 = arith.select %11, %13, %14 : vector<8x128xi1>, vector<8x128xf32>
    %c1_i32 = arith.constant 1 : i32
    %16 = vector.broadcast %c1_i32 : i32 to vector<8x128xi32>
    %17 = arith.cmpi eq, %9, %16 : vector<8x128xi32>
    %cst_8 = arith.constant 0.000000e+00 : f32
    %18 = vector.shape_cast %8 : vector<1x128xf32> to vector<1x128xf32>
    %19 = vector.broadcast %18 : vector<1x128xf32> to vector<8x128xf32>
    %20 = vector.broadcast %cst_8 : f32 to vector<8x128xf32>
    %21 = arith.select %17, %19, %20 : vector<8x128xi1>, vector<8x128xf32>
    %22 = arith.addf %15, %21 : vector<8x128xf32>
    %c0_9 = arith.constant 0 : index
    %c0_10 = arith.constant 0 : index
    %23 = vector.load %arg4[%c0_9, %c0_10] : memref<8x128xf32, #tpu.memory_space<vmem>>, vector<8x128xf32>
    tpu.vector_store %arg4[%c0_9, %c0_10], %22 {strides = array<i32>} : memref<8x128xf32, #tpu.memory_space<vmem>>, vector<8x128xf32>,
    return
  }
  func.func @transform_0(%arg0: i32) -> (i32, i32) {
    %c0_i32 = arith.constant 0 : i32
    %c0_i32_0 = arith.constant 0 : i32
    return %arg0, %c0_i32 : i32, i32
  }
  func.func @transform_1(%arg0: i32) -> (i32, i32) {
    %c0_i32 = arith.constant 0 : i32
    %c0_i32_0 = arith.constant 0 : i32
    %c0_i32_1 = arith.constant 0 : i32
    return %c0_i32, %c0_i32_0 : i32, i32
  }
  func.func @transform_2(%arg0: i32) -> (i32, i32) {
    %c0_i32 = arith.constant 0 : i32
    %c0_i32_0 = arith.constant 0 : i32
    return %arg0, %c0_i32 : i32, i32
  }
  func.func @transform_3(%arg0: i32) -> (i32, i32) {
    %c0_i32 = arith.constant 0 : i32
    %c0_i32_0 = arith.constant 0 : i32
    return %arg0, %c0_i32 : i32, i32
  }
}

module attributes {stable_mosaic.version = 11 : i64} {
  func.func @bn_relu_add_proj_kernel(%arg0: i32, %arg1: memref<256x128xf32, #tpu.memory_space<vmem>>, %arg2: memref<1x128xf32, #tpu.memory_space<vmem>>, %arg3: memref<1x128xf32, #tpu.memory_space<vmem>>, %arg4: memref<256x4xbf16, #tpu.memory_space<vmem>>, %arg5: memref<4x128xbf16, #tpu.memory_space<vmem>>, %arg6: memref<256x128xf32, #tpu.memory_space<vmem>>) attributes {dimension_semantics = [#tpu.dimension_semantics<parallel>], iteration_bounds = array<i64: 1>, scalar_prefetch = 0 : i64, scratch_operands = 0 : i64, tpu.core_type = #tpu.core_type<tc>, window_params = [{transform_indices = @transform_0, window_bounds = array<i64: 256, 128>}, {pipeline_mode = #tpu.pipeline_mode<synchronous>, transform_indices = @transform_1, window_bounds = array<i64: 1, 128>}, {pipeline_mode = #tpu.pipeline_mode<synchronous>, transform_indices = @transform_2, window_bounds = array<i64: 1, 128>}, {transform_indices = @transform_3, window_bounds = array<i64: 256, 4>}, {pipeline_mode = #tpu.pipeline_mode<synchronous>, transform_indices = @transform_4, window_bounds = array<i64: 4, 128>}, {transform_indices = @transform_5, window_bounds = array<i64: 256, 128>}]} {
    %c0 = arith.constant 0 : index
    %c0_0 = arith.constant 0 : index
    %0 = vector.load %arg1[%c0, %c0_0] : memref<256x128xf32, #tpu.memory_space<vmem>>, vector<256x128xf32>
    %c0_1 = arith.constant 0 : index
    %c0_2 = arith.constant 0 : index
    %1 = vector.load %arg2[%c0_1, %c0_2] : memref<1x128xf32, #tpu.memory_space<vmem>>, vector<1x128xf32>
    %2 = vector.broadcast %1 : vector<1x128xf32> to vector<256x128xf32>
    %3 = arith.mulf %0, %2 : vector<256x128xf32>
    %c0_3 = arith.constant 0 : index
    %c0_4 = arith.constant 0 : index
    %4 = vector.load %arg3[%c0_3, %c0_4] : memref<1x128xf32, #tpu.memory_space<vmem>>, vector<1x128xf32>
    %5 = vector.broadcast %4 : vector<1x128xf32> to vector<256x128xf32>
    %6 = arith.addf %3, %5 : vector<256x128xf32>
    %cst = arith.constant 0.000000e+00 : f32
    %7 = vector.broadcast %cst : f32 to vector<256x128xf32>
    %8 = arith.maximumf %6, %7 : vector<256x128xf32>
    %c0_5 = arith.constant 0 : index
    %c0_6 = arith.constant 0 : index
    %9 = vector.load %arg4[%c0_5, %c0_6] : memref<256x4xbf16, #tpu.memory_space<vmem>>, vector<256x4xbf16>
    %c0_7 = arith.constant 0 : index
    %c0_8 = arith.constant 0 : index
    %10 = vector.load %arg5[%c0_7, %c0_8] : memref<4x128xbf16, #tpu.memory_space<vmem>>, vector<4x128xbf16>
    %cst_9 = arith.constant dense<0.000000e+00> : vector<256x128xf32>
    %11 = tpu.matmul %9, %10, %cst_9 {dimension_numbers = #tpu.dot_dimension_numbers<[1], [0], [0], [1], [0, 0, 1, 1], [], []>} : vector<256x4xbf16>, vector<4x128xbf16>, vector<256x128xf32> -> vector<256x128xf32>
    %12 = arith.addf %8, %11 : vector<256x128xf32>
    %c0_10 = arith.constant 0 : index
    %c0_11 = arith.constant 0 : index
    %13 = vector.load %arg6[%c0_10, %c0_11] : memref<256x128xf32, #tpu.memory_space<vmem>>, vector<256x128xf32>
    tpu.vector_store %arg6[%c0_10, %c0_11], %12 {strides = array<i32>} : memref<256x128xf32, #tpu.memory_space<vmem>>, vector<256x128xf32>,
    return
  }
  func.func @transform_0(%arg0: i32) -> (i32, i32) {
    %c0_i32 = arith.constant 0 : i32
    %c0_i32_0 = arith.constant 0 : i32
    return %arg0, %c0_i32 : i32, i32
  }
  func.func @transform_1(%arg0: i32) -> (i32, i32) {
    %c0_i32 = arith.constant 0 : i32
    %c0_i32_0 = arith.constant 0 : i32
    %c0_i32_1 = arith.constant 0 : i32
    return %c0_i32, %c0_i32_0 : i32, i32
  }
  func.func @transform_2(%arg0: i32) -> (i32, i32) {
    %c0_i32 = arith.constant 0 : i32
    %c0_i32_0 = arith.constant 0 : i32
    %c0_i32_1 = arith.constant 0 : i32
    return %c0_i32, %c0_i32_0 : i32, i32
  }
  func.func @transform_3(%arg0: i32) -> (i32, i32) {
    %c0_i32 = arith.constant 0 : i32
    %c0_i32_0 = arith.constant 0 : i32
    return %arg0, %c0_i32 : i32, i32
  }
  func.func @transform_4(%arg0: i32) -> (i32, i32) {
    %c0_i32 = arith.constant 0 : i32
    %c0_i32_0 = arith.constant 0 : i32
    %c0_i32_1 = arith.constant 0 : i32
    return %c0_i32, %c0_i32_0 : i32, i32
  }
  func.func @transform_5(%arg0: i32) -> (i32, i32) {
    %c0_i32 = arith.constant 0 : i32
    %c0_i32_0 = arith.constant 0 : i32
    return %arg0, %c0_i32 : i32, i32
  }
}

</mosaic_0001>

<llo_original>
// kernel: preact_block_forward.5
$region0: #{preact_block_forward.5}
  #allocation0 [shape = 'u32[]', space=smem, size = 0x4, offset = 0x4, fixed_abs, tag = 'smem constant byte address 0x4 - core index']
  #allocation1 [shape = 'u32[144,128]{1,0:T(1,128)}', space=vmem, size = 0x12000, scoped, tag = 'internal scratch']
  %s0 = inlined_call_operand.vmem [shape: bf16[256,128], index: 0, kind: input, shape index: {}]
  %s1 = inlined_call_operand.vmem [shape: f32[1,128], index: 1, kind: input, shape index: {}]
  %s2 = inlined_call_operand.vmem [shape: f32[1,128], index: 2, kind: input, shape index: {}]
  %s3 = inlined_call_operand.vmem [shape: bf16[256,128], index: 3, kind: output, shape index: {}]
  %s4 = sld [smem:[#allocation0]]
  $region22: #{preact_block_forward.5} parent=0
    _
  %s6 = ssub.s32 1, %s4
  %s7 = scalar_select 0, %s6, %s4
  // Predicated region
  $region2: #{preact_block_forward.5} parent=0 // pred_check
    _
  $region3: #{preact_block_forward.5} parent=0 // pred_check_branch
    %9 = sbr.rel (0) target = $region5
  $region4: #{preact_block_forward.5} parent=0 // pred_region
    _
  $region5: #{preact_block_forward.5} parent=0 // pred_fallthru
    _
  // Predicated region
  $region6: #{preact_block_forward.5} parent=0 // pred_check
    _
  $region7: #{preact_block_forward.5} parent=0 // pred_check_branch
    %11 = sbr.rel (0) target = $region9
  $region8: #{preact_block_forward.5} parent=0 // pred_region
    _
  $region9: #{preact_block_forward.5} parent=0 // pred_fallthru
    _
  // Predicated region
  $region10: #{preact_block_forward.5} parent=0 // pred_check
    _
  $region11: #{preact_block_forward.5} parent=0 // pred_check_branch
    %13 = sbr.rel (0) target = $region13
  $region12: #{preact_block_forward.5} parent=0 // pred_region
    _
  $region13: #{preact_block_forward.5} parent=0 // pred_fallthru
    _
  %v14 = vld [vmem:[%s0] sm:$0xf]
  %v15 = vld [vmem:[%s0 + $0x4] sm:$0xf]
  %v16 = vld [vmem:[%s0 + $0x8] sm:$0xf]
  %v17 = vld [vmem:[%s0 + $0xc] sm:$0xf]
  %v18 = vld [vmem:[%s0 + $0x10] sm:$0xf]
  %v19 = vld [vmem:[%s0 + $0x14] sm:$0xf]
  %v20 = vld [vmem:[%s0 + $0x18] sm:$0xf]
  %v21 = vld [vmem:[%s0 + $0x1c] sm:$0xf]
  %v22 = vld [vmem:[%s0 + $0x20] sm:$0xf]
  %v23 = vld [vmem:[%s0 + $0x24] sm:$0xf]
  %v24 = vld [vmem:[%s0 + $0x28] sm:$0xf]
  %v25 = vld [vmem:[%s0 + $0x2c] sm:$0xf]
  %v26 = vld [vmem:[%s0 + $0x30] sm:$0xf]
  %v27 = vld [vmem:[%s0 + $0x34] sm:$0xf]
  %v28 = vld [vmem:[%s0 + $0x38] sm:$0xf]
  %v29 = vld [vmem:[%s0 + $0x3c] sm:$0xf]
  %v30 = vld [vmem:[%s0 + $0x40] sm:$0xf]
  %v31 = vld [vmem:[%s0 + $0x44] sm:$0xf]
  %v32 = vld [vmem:[%s0 + $0x48] sm:$0xf]
  %v33 = vld [vmem:[%s0 + $0x4c] sm:$0xf]
  %v34 = vld [vmem:[%s0 + $0x50] sm:$0xf]
  %v35 = vld [vmem:[%s0 + $0x54] sm:$0xf]
  %v36 = vld [vmem:[%s0 + $0x58] sm:$0xf]
  %v37 = vld [vmem:[%s0 + $0x5c] sm:$0xf]
  %v38 = vld [vmem:[%s0 + $0x60] sm:$0xf]
  %v39 = vld [vmem:[%s0 + $0x64] sm:$0xf]
  %v40 = vld [vmem:[%s0 + $0x68] sm:$0xf]
  %v41 = vld [vmem:[%s0 + $0x6c] sm:$0xf]
  %v42 = vld [vmem:[%s0 + $0x70] sm:$0xf]
  %v43 = vld [vmem:[%s0 + $0x74] sm:$0xf]
  %v44 = vld [vmem:[%s0 + $0x78] sm:$0xf]
  %v45 = vld [vmem:[%s0 + $0x7c] sm:$0xf]
  %v46 = vunpack.c.l.bf16 %v14
  %v47 = vunpack.c.l.bf16 %v15
  %v48 = vunpack.c.l.bf16 %v16
  %v49 = vunpack.c.l.bf16 %v17
  %v50 = vunpack.c.l.bf16 %v18
  %v51 = vunpack.c.l.bf16 %v19
  %v52 = vunpack.c.l.bf16 %v20
  %v53 = vunpack.c.l.bf16 %v21
  %v54 = vunpack.c.l.bf16 %v22
  %v55 = vunpack.c.l.bf16 %v23
  %v56 = vunpack.c.l.bf16 %v24
  %v57 = vunpack.c.l.bf16 %v25
  %v58 = vunpack.c.l.bf16 %v26
  %v59 = vunpack.c.l.bf16 %v27
  %v60 = vunpack.c.l.bf16 %v28
  %v61 = vunpack.c.l.bf16 %v29
  %v62 = vunpack.c.l.bf16 %v30
  %v63 = vunpack.c.l.bf16 %v31
  %v64 = vunpack.c.l.bf16 %v32
  %v65 = vunpack.c.l.bf16 %v33
  %v66 = vunpack.c.l.bf16 %v34
  %v67 = vunpack.c.l.bf16 %v35
  %v68 = vunpack.c.l.bf16 %v36
  %v69 = vunpack.c.l.bf16 %v37
  %v70 = vunpack.c.l.bf16 %v38
  %v71 = vunpack.c.l.bf16 %v39
  %v72 = vunpack.c.l.bf16 %v40
  %v73 = vunpack.c.l.bf16 %v41
  %v74 = vunpack.c.l.bf16 %v42
  %v75 = vunpack.c.l.bf16 %v43
  %v76 = vunpack.c.l.bf16 %v44
  %v77 = vunpack.c.l.bf16 %v45
  %v78 = vld [vmem:[%s1] sm:$0x1]
  %v80 = vlaneseq
  %v81 = vshrl.u32 %v80, 7
  %v82 = vsub.s32 0, %v81
  %v83 = vrot.slane %v78, %v82
  %v85 = vmul.f32 %v46, %v83
  %v86 = vmul.f32 %v47, %v83
  %v87 = vmul.f32 %v48, %v83
  %v88 = vmul.f32 %v49, %v83
  %v89 = vmul.f32 %v50, %v83
  %v90 = vmul.f32 %v51, %v83
  %v91 = vmul.f32 %v52, %v83
  %v92 = vmul.f32 %v53, %v83
  %v93 = vmul.f32 %v54, %v83
  %v94 = vmul.f32 %v55, %v83
  %v95 = vmul.f32 %v56, %v83
  %v96 = vmul.f32 %v57, %v83
  %v97 = vmul.f32 %v58, %v83
  %v98 = vmul.f32 %v59, %v83
  %v99 = vmul.f32 %v60, %v83
  %v100 = vmul.f32 %v61, %v83
  %v101 = vmul.f32 %v62, %v83
  %v102 = vmul.f32 %v63, %v83
  %v103 = vmul.f32 %v64, %v83
  %v104 = vmul.f32 %v65, %v83
  %v105 = vmul.f32 %v66, %v83
  %v106 = vmul.f32 %v67, %v83
  %v107 = vmul.f32 %v68, %v83
  %v108 = vmul.f32 %v69, %v83
  %v109 = vmul.f32 %v70, %v83
  %v110 = vmul.f32 %v71, %v83
  %v111 = vmul.f32 %v72, %v83
  %v112 = vmul.f32 %v73, %v83
  %v113 = vmul.f32 %v74, %v83
  %v114 = vmul.f32 %v75, %v83
  %v115 = vmul.f32 %v76, %v83
  %v116 = vmul.f32 %v77, %v83
  %v117 = vld [vmem:[%s2] sm:$0x1]
  %v119 = vlaneseq
  %v120 = vshrl.u32 %v119, 7
  %v121 = vsub.s32 0, %v120
  %v122 = vrot.slane %v117, %v121
  %v124 = vadd.f32 %v85, %v122
  %v125 = vadd.f32 %v86, %v122
  %v126 = vadd.f32 %v87, %v122
  %v127 = vadd.f32 %v88, %v122
  %v128 = vadd.f32 %v89, %v122
  %v129 = vadd.f32 %v90, %v122
  %v130 = vadd.f32 %v91, %v122
  %v131 = vadd.f32 %v92, %v122
  %v132 = vadd.f32 %v93, %v122
  %v133 = vadd.f32 %v94, %v122
  %v134 = vadd.f32 %v95, %v122
  %v135 = vadd.f32 %v96, %v122
  %v136 = vadd.f32 %v97, %v122
  %v137 = vadd.f32 %v98, %v122
  %v138 = vadd.f32 %v99, %v122
  %v139 = vadd.f32 %v100, %v122
  %v140 = vadd.f32 %v101, %v122
  %v141 = vadd.f32 %v102, %v122
  %v142 = vadd.f32 %v103, %v122
  %v143 = vadd.f32 %v104, %v122
  %v144 = vadd.f32 %v105, %v122
  %v145 = vadd.f32 %v106, %v122
  %v146 = vadd.f32 %v107, %v122
  %v147 = vadd.f32 %v108, %v122
  %v148 = vadd.f32 %v109, %v122
  %v149 = vadd.f32 %v110, %v122
  %v150 = vadd.f32 %v111, %v122
  %v151 = vadd.f32 %v112, %v122
  %v152 = vadd.f32 %v113, %v122
  %v153 = vadd.f32 %v114, %v122
  %v154 = vadd.f32 %v115, %v122
  %v155 = vadd.f32 %v116, %v122
  %v156 = vmax.f32 %v124, 0.0
  %v157 = vmax.f32 %v125, 0.0
  %v158 = vmax.f32 %v126, 0.0
  %v159 = vmax.f32 %v127, 0.0
  %v160 = vmax.f32 %v128, 0.0
  %v161 = vmax.f32 %v129, 0.0
  %v162 = vmax.f32 %v130, 0.0
  %v163 = vmax.f32 %v131, 0.0
  %v164 = vmax.f32 %v132, 0.0
  %v165 = vmax.f32 %v133, 0.0
  %v166 = vmax.f32 %v134, 0.0
  %v167 = vmax.f32 %v135, 0.0
  %v168 = vmax.f32 %v136, 0.0
  %v169 = vmax.f32 %v137, 0.0
  %v170 = vmax.f32 %v138, 0.0
  %v171 = vmax.f32 %v139, 0.0
  %v172 = vmax.f32 %v140, 0.0
  %v173 = vmax.f32 %v141, 0.0
  %v174 = vmax.f32 %v142, 0.0
  %v175 = vmax.f32 %v143, 0.0
  %v176 = vmax.f32 %v144, 0.0
  %v177 = vmax.f32 %v145, 0.0
  %v178 = vmax.f32 %v146, 0.0
  %v179 = vmax.f32 %v147, 0.0
  %v180 = vmax.f32 %v148, 0.0
  %v181 = vmax.f32 %v149, 0.0
  %v182 = vmax.f32 %v150, 0.0
  %v183 = vmax.f32 %v151, 0.0
  %v184 = vmax.f32 %v152, 0.0
  %v185 = vmax.f32 %v153, 0.0
  %v186 = vmax.f32 %v154, 0.0
  %v187 = vmax.f32 %v155, 0.0
  %v188 = vpack.c.bf16 %v157, %v156
  %v189 = vpack.c.bf16 %v159, %v158
  %v190 = vpack.c.bf16 %v161, %v160
  %v191 = vpack.c.bf16 %v163, %v162
  %v192 = vpack.c.bf16 %v165, %v164
  %v193 = vpack.c.bf16 %v167, %v166
  %v194 = vpack.c.bf16 %v169, %v168
  %v195 = vpack.c.bf16 %v171, %v170
  %v196 = vpack.c.bf16 %v173, %v172
  %v197 = vpack.c.bf16 %v175, %v174
  %v198 = vpack.c.bf16 %v177, %v176
  %v199 = vpack.c.bf16 %v179, %v178
  %v200 = vpack.c.bf16 %v181, %v180
  %v201 = vpack.c.bf16 %v183, %v182
  %v202 = vpack.c.bf16 %v185, %v184
  %v203 = vpack.c.bf16 %v187, %v186
  %v220 = vunpack.c.l.b16 %v188
  %v221 = vunpack.c.h.b16 %v188
  %v222 = vunpack.c.l.b16 %v189
  %v223 = vunpack.c.h.b16 %v189
  %v224 = vunpack.c.l.b16 %v190
  %v225 = vunpack.c.h.b16 %v190
  %v226 = vunpack.c.l.b16 %v191
  %v227 = vunpack.c.h.b16 %v191
  %v228 = vunpack.c.l.b16 %v192
  %v229 = vunpack.c.h.b16 %v192
  %v230 = vunpack.c.l.b16 %v193
  %v231 = vunpack.c.h.b16 %v193
  %v232 = vunpack.c.l.b16 %v194
  %v233 = vunpack.c.h.b16 %v194
  %v234 = vunpack.c.l.b16 %v195
  %v235 = vunpack.c.h.b16 %v195
  %v236 = vunpack.c.l.b16 %v196
  %v237 = vunpack.c.h.b16 %v196
  %v238 = vunpack.c.l.b16 %v197
  %v239 = vunpack.c.h.b16 %v197
  %v240 = vunpack.c.l.b16 %v198
  %v241 = vunpack.c.h.b16 %v198
  %v242 = vunpack.c.l.b16 %v199
  %v243 = vunpack.c.h.b16 %v199
  %v244 = vunpack.c.l.b16 %v200
  %v245 = vunpack.c.h.b16 %v200
  %v246 = vunpack.c.l.b16 %v201
  %v247 = vunpack.c.h.b16 %v201
  %v248 = vunpack.c.l.b16 %v202
  %v249 = vunpack.c.h.b16 %v202
  %v250 = vunpack.c.l.b16 %v203
  %v251 = vunpack.c.h.b16 %v203
  %v252 = vpack.c.b16 %v220, %v220
  %v253 = vpack.c.b16 %v221, %v221
  %v254 = vpack.c.b16 %v222, %v222
  %v255 = vpack.c.b16 %v223, %v223
  %v256 = vpack.c.b16 %v224, %v224
  %v257 = vpack.c.b16 %v225, %v225
  %v258 = vpack.c.b16 %v226, %v226
  %v259 = vpack.c.b16 %v227, %v227
  %v260 = vpack.c.b16 %v228, %v228
  %v261 = vpack.c.b16 %v229, %v229
  %v262 = vpack.c.b16 %v230, %v230
  %v263 = vpack.c.b16 %v231, %v231
  %v264 = vpack.c.b16 %v232, %v232
  %v265 = vpack.c.b16 %v233, %v233
  %v266 = vpack.c.b16 %v234, %v234
  %v267 = vpack.c.b16 %v235, %v235
  %v268 = vpack.c.b16 %v236, %v236
  %v269 = vpack.c.b16 %v237, %v237
  %v270 = vpack.c.b16 %v238, %v238
  %v271 = vpack.c.b16 %v239, %v239
  %v272 = vpack.c.b16 %v240, %v240
  %v273 = vpack.c.b16 %v241, %v241
  %v274 = vpack.c.b16 %v242, %v242
  %v275 = vpack.c.b16 %v243, %v243
  %v276 = vpack.c.b16 %v244, %v244
  %v277 = vpack.c.b16 %v245, %v245
  %v278 = vpack.c.b16 %v246, %v246
  %v279 = vpack.c.b16 %v247, %v247
  %v280 = vpack.c.b16 %v248, %v248
  %v281 = vpack.c.b16 %v249, %v249
  %v282 = vpack.c.b16 %v250, %v250
  %v283 = vpack.c.b16 %v251, %v251
  %316 = vst [vmem:[%s3] sm:$0xf] %v252
  %317 = vst [vmem:[%s3 + $0x4] sm:$0xf] %v253
  %318 = vst [vmem:[%s3 + $0x8] sm:$0xf] %v254
  %319 = vst [vmem:[%s3 + $0xc] sm:$0xf] %v255
  %320 = vst [vmem:[%s3 + $0x10] sm:$0xf] %v256
  %321 = vst [vmem:[%s3 + $0x14] sm:$0xf] %v257
  %322 = vst [vmem:[%s3 + $0x18] sm:$0xf] %v258
  %323 = vst [vmem:[%s3 + $0x1c] sm:$0xf] %v259
  %324 = vst [vmem:[%s3 + $0x20] sm:$0xf] %v260
  %325 = vst [vmem:[%s3 + $0x24] sm:$0xf] %v261
  %326 = vst [vmem:[%s3 + $0x28] sm:$0xf] %v262
  %327 = vst [vmem:[%s3 + $0x2c] sm:$0xf] %v263
  %328 = vst [vmem:[%s3 + $0x30] sm:$0xf] %v264
  %329 = vst [vmem:[%s3 + $0x34] sm:$0xf] %v265
  %330 = vst [vmem:[%s3 + $0x38] sm:$0xf] %v266
  %331 = vst [vmem:[%s3 + $0x3c] sm:$0xf] %v267
  %332 = vst [vmem:[%s3 + $0x40] sm:$0xf] %v268
  %333 = vst [vmem:[%s3 + $0x44] sm:$0xf] %v269
  %334 = vst [vmem:[%s3 + $0x48] sm:$0xf] %v270
  %335 = vst [vmem:[%s3 + $0x4c] sm:$0xf] %v271
  %336 = vst [vmem:[%s3 + $0x50] sm:$0xf] %v272
  %337 = vst [vmem:[%s3 + $0x54] sm:$0xf] %v273
  %338 = vst [vmem:[%s3 + $0x58] sm:$0xf] %v274
  %339 = vst [vmem:[%s3 + $0x5c] sm:$0xf] %v275
  %340 = vst [vmem:[%s3 + $0x60] sm:$0xf] %v276
  %341 = vst [vmem:[%s3 + $0x64] sm:$0xf] %v277
  %342 = vst [vmem:[%s3 + $0x68] sm:$0xf] %v278
  %343 = vst [vmem:[%s3 + $0x6c] sm:$0xf] %v279
  %344 = vst [vmem:[%s3 + $0x70] sm:$0xf] %v280
  %345 = vst [vmem:[%s3 + $0x74] sm:$0xf] %v281
  %346 = vst [vmem:[%s3 + $0x78] sm:$0xf] %v282
  %347 = vst [vmem:[%s3 + $0x7c] sm:$0xf] %v283
  // Predicated region
  $region14: #{preact_block_forward.5} parent=0 // pred_check
    _
  $region15: #{preact_block_forward.5} parent=0 // pred_check_branch
    %349 = sbr.rel (0) target = $region17
  $region16: #{preact_block_forward.5} parent=0 // pred_region
    _
  $region17: #{preact_block_forward.5} parent=0 // pred_fallthru
    _
  // Predicated region
  $region18: #{preact_block_forward.5} parent=0 // pred_check
    _
  $region19: #{preact_block_forward.5} parent=0 // pred_check_branch
    %351 = sbr.rel (0) target = $region21
  $region20: #{preact_block_forward.5} parent=0 // pred_region
    _
  $region21: #{preact_block_forward.5} parent=0 // pred_fallthru
    _

// kernel: preact_block_forward.4
$region0: #{preact_block_forward.4}
  #allocation0 [shape = 'u32[]', space=smem, size = 0x4, offset = 0x4, fixed_abs, tag = 'smem constant byte address 0x4 - core index']
  #allocation1 [shape = 'u32[144,128]{1,0:T(1,128)}', space=vmem, size = 0x12000, scoped, tag = 'internal scratch']
  %s0 = inlined_call_operand.vmem [shape: bf16[256,36], index: 0, kind: input, shape index: {}]
  %s1 = inlined_call_operand.vmem [shape: bf16[36,128], index: 1, kind: input, shape index: {}]
  %s2 = inlined_call_operand.vmem [shape: bf16[256,128], index: 2, kind: output, shape index: {0}]
  %s3 = inlined_call_operand.vmem [shape: f32[8,128], index: 3, kind: output, shape index: {1}]
  %4 = xla_tuple %s2, %s3
  %s5 = sld [smem:[#allocation0]]
  $region26: #{preact_block_forward.4} parent=0
    _
  %s7 = ssub.s32 1, %s5
  %s8 = scalar_select 0, %s7, %s5
  // Predicated region
  $region2: #{preact_block_forward.4} parent=0 // pred_check
    _
  $region3: #{preact_block_forward.4} parent=0 // pred_check_branch
    %10 = sbr.rel (0) target = $region5
  $region4: #{preact_block_forward.4} parent=0 // pred_region
    _
  $region5: #{preact_block_forward.4} parent=0 // pred_fallthru
    _
  // Predicated region
  $region6: #{preact_block_forward.4} parent=0 // pred_check
    _
  $region7: #{preact_block_forward.4} parent=0 // pred_check_branch
    %12 = sbr.rel (0) target = $region9
  $region8: #{preact_block_forward.4} parent=0 // pred_region
    _
  $region9: #{preact_block_forward.4} parent=0 // pred_fallthru
    _
  %v14 = vld [vmem:[%s0] sm:$0xf]
  %v15 = vld [vmem:[%s0 + $0x4] sm:$0xf]
  %v16 = vld [vmem:[%s0 + $0x8] sm:$0xf]
  %v17 = vld [vmem:[%s0 + $0xc] sm:$0xf]
  %v18 = vld [vmem:[%s0 + $0x10] sm:$0xf]
  %v19 = vld [vmem:[%s0 + $0x14] sm:$0xf]
  %v20 = vld [vmem:[%s0 + $0x18] sm:$0xf]
  %v21 = vld [vmem:[%s0 + $0x1c] sm:$0xf]
  %v22 = vld [vmem:[%s0 + $0x20] sm:$0xf]
  %v23 = vld [vmem:[%s0 + $0x24] sm:$0xf]
  %v24 = vld [vmem:[%s0 + $0x28] sm:$0xf]
  %v25 = vld [vmem:[%s0 + $0x2c] sm:$0xf]
  %v26 = vld [vmem:[%s0 + $0x30] sm:$0xf]
  %v27 = vld [vmem:[%s0 + $0x34] sm:$0xf]
  %v28 = vld [vmem:[%s0 + $0x38] sm:$0xf]
  %v29 = vld [vmem:[%s0 + $0x3c] sm:$0xf]
  %v30 = vld [vmem:[%s0 + $0x40] sm:$0xf]
  %v31 = vld [vmem:[%s0 + $0x44] sm:$0xf]
  %v32 = vld [vmem:[%s0 + $0x48] sm:$0xf]
  %v33 = vld [vmem:[%s0 + $0x4c] sm:$0xf]
  %v34 = vld [vmem:[%s0 + $0x50] sm:$0xf]
  %v35 = vld [vmem:[%s0 + $0x54] sm:$0xf]
  %v36 = vld [vmem:[%s0 + $0x58] sm:$0xf]
  %v37 = vld [vmem:[%s0 + $0x5c] sm:$0xf]
  %v38 = vld [vmem:[%s0 + $0x60] sm:$0xf]
  %v39 = vld [vmem:[%s0 + $0x64] sm:$0xf]
  %v40 = vld [vmem:[%s0 + $0x68] sm:$0xf]
  %v41 = vld [vmem:[%s0 + $0x6c] sm:$0xf]
  %v42 = vld [vmem:[%s0 + $0x70] sm:$0xf]
  %v43 = vld [vmem:[%s0 + $0x74] sm:$0xf]
  %v44 = vld [vmem:[%s0 + $0x78] sm:$0xf]
  %v45 = vld [vmem:[%s0 + $0x7c] sm:$0xf]
  %v46 = vld [vmem:[%s1] sm:$0xf]
  %v47 = vld [vmem:[%s1 + $0x4] sm:$0xf]
  %v48 = vld [vmem:[%s1 + $0x8] sm:$0xf]
  %v49 = vld [vmem:[%s1 + $0xc] sm:$0xf]
  %v50 = vld [vmem:[%s1 + $0x10] sm:$0x3]
  %v83 = vunpack.c.l.b16 %v14
  %v84 = vunpack.c.l.b16 %v15
  %v85 = vunpack.c.l.b16 %v16
  %v86 = vunpack.c.l.b16 %v17
  %v87 = vunpack.c.l.b16 %v18
  %v88 = vunpack.c.l.b16 %v19
  %v89 = vunpack.c.l.b16 %v20
  %v90 = vunpack.c.l.b16 %v21
  %v91 = vunpack.c.l.b16 %v22
  %v92 = vunpack.c.l.b16 %v23
  %v93 = vunpack.c.l.b16 %v24
  %v94 = vunpack.c.l.b16 %v25
  %v95 = vunpack.c.l.b16 %v26
  %v96 = vunpack.c.l.b16 %v27
  %v97 = vunpack.c.l.b16 %v28
  %v98 = vunpack.c.l.b16 %v29
  %v99 = vunpack.c.l.b16 %v30
  %v100 = vunpack.c.l.b16 %v31
  %v101 = vunpack.c.l.b16 %v32
  %v102 = vunpack.c.l.b16 %v33
  %v103 = vunpack.c.l.b16 %v34
  %v104 = vunpack.c.l.b16 %v35
  %v105 = vunpack.c.l.b16 %v36
  %v106 = vunpack.c.l.b16 %v37
  %v107 = vunpack.c.l.b16 %v38
  %v108 = vunpack.c.l.b16 %v39
  %v109 = vunpack.c.l.b16 %v40
  %v110 = vunpack.c.l.b16 %v41
  %v111 = vunpack.c.l.b16 %v42
  %v112 = vunpack.c.l.b16 %v43
  %v113 = vunpack.c.l.b16 %v44
  %v114 = vunpack.c.l.b16 %v45
  %v115 = vpack.c.b16 %v84, %v83
  %v116 = vpack.c.b16 %v86, %v85
  %v117 = vpack.c.b16 %v88, %v87
  %v118 = vpack.c.b16 %v90, %v89
  %v119 = vpack.c.b16 %v92, %v91
  %v120 = vpack.c.b16 %v94, %v93
  %v121 = vpack.c.b16 %v96, %v95
  %v122 = vpack.c.b16 %v98, %v97
  %v123 = vpack.c.b16 %v100, %v99
  %v124 = vpack.c.b16 %v102, %v101
  %v125 = vpack.c.b16 %v104, %v103
  %v126 = vpack.c.b16 %v106, %v105
  %v127 = vpack.c.b16 %v108, %v107
  %v128 = vpack.c.b16 %v110, %v109
  %v129 = vpack.c.b16 %v112, %v111
  %v130 = vpack.c.b16 %v114, %v113
  %v136 = vunpack.c.l.b16 %v46
  %v137 = vunpack.c.l.b16 %v47
  %v138 = vunpack.c.l.b16 %v48
  %v139 = vunpack.c.l.b16 %v49
  %v140 = vunpack.c.l.b16 %v50
  %v141 = vpack.c.b16 %v137, %v136
  %v142 = vpack.c.b16 %v139, %v138
  %v143 = vpack.c.b16 %v140, %v140
  %vm146 = vcmask 293888
  %v148 = vsel %vm146, %v115, 0
  %v151 = vsel %vm146, %v116, 0
  %v154 = vsel %vm146, %v117, 0
  %v157 = vsel %vm146, %v118, 0
  %v160 = vsel %vm146, %v119, 0
  %v163 = vsel %vm146, %v120, 0
  %v166 = vsel %vm146, %v121, 0
  %v169 = vsel %vm146, %v122, 0
  %v172 = vsel %vm146, %v123, 0
  %v175 = vsel %vm146, %v124, 0
  %v178 = vsel %vm146, %v125, 0
  %v181 = vsel %vm146, %v126, 0
  %v184 = vsel %vm146, %v127, 0
  %v187 = vsel %vm146, %v128, 0
  %v190 = vsel %vm146, %v129, 0
  %v193 = vsel %vm146, %v130, 0
  %vm195 = vcmask 1041408
  %v197 = vsel %vm195, %v143, 0
  %199 = vmatprep.subr.bf16.mxu0 0
  %200 = vmatpush1.bf16.msra.mxu0 0
  %201 = vmatprep.subr.bf16.mxu0 0
  %202 = vmatpush1.bf16.msra.mxu0 0
  %203 = vmatprep.subr.bf16.mxu0 0
  %204 = vmatpush1.bf16.msra.mxu0 0
  %205 = vmatprep.subr.bf16.mxu0 0
  %206 = vmatpush1.bf16.msra.mxu0 0
  %207 = vmatprep.subr.bf16.mxu0 0
  %208 = vmatpush1.bf16.msra.mxu0 0
  %209 = vmatprep.subr.bf16.mxu0 0
  %210 = vmatpush1.bf16.msra.mxu0 %v197
  %211 = vmatprep.subr.bf16.mxu0 0
  %212 = vmatpush1.bf16.msra.mxu0 %v142
  %213 = vmatprep.subr.bf16.mxu0 0
  %214 = vmatpush1.bf16.msra.mxu0 %v141
  %215 = vmatprep.subr.bf16.mxu0 0
  %216 = vmatpush2.bf16.msra.mxu0 0
  %217 = vmatprep.subr.bf16.mxu0 0
  %218 = vmatpush2.bf16.msra.mxu0 0
  %219 = vmatprep.subr.bf16.mxu0 0
  %220 = vmatpush2.bf16.msra.mxu0 0
  %221 = vmatprep.subr.bf16.mxu0 0
  %222 = vmatpush2.bf16.msra.mxu0 0
  %223 = vmatprep.subr.bf16.mxu0 0
  %224 = vmatpush2.bf16.msra.mxu0 0
  %225 = vmatprep.subr.bf16.mxu0 0
  %226 = vmatpush2.bf16.msra.mxu0 0
  %227 = vmatprep.subr.bf16.mxu0 0
  %228 = vmatpush2.bf16.msra.mxu0 0
  %229 = vmatprep.subr.bf16.mxu0 0
  %230 = vmatpush2.bf16.msra.mxu0 0
  %231 = vmatprep.mubr.bf16.mxu0 0
  %232 = vmatmul.mubr.bf16.gmra.mxu0 %v148
  %v233 = vpop.f32.mrf.mxu0
  %v234 = vadd.f32 0.0, %v233
  %v235 = vpop.f32.mrf.mxu0
  %v236 = vpop.f32.mrf.mxu0
  %v237 = vadd.f32 0.0, %v236
  %v238 = vpop.f32.mrf.mxu0
  %239 = vmatprep.mubr.bf16.mxu0 0
  %240 = vmatmul.mubr.bf16.gmra.mxu0 %v151
  %v241 = vpop.f32.mrf.mxu0
  %v242 = vadd.f32 0.0, %v241
  %v243 = vpop.f32.mrf.mxu0
  %v244 = vpop.f32.mrf.mxu0
  %v245 = vadd.f32 0.0, %v244
  %v246 = vpop.f32.mrf.mxu0
  %247 = vmatprep.mubr.bf16.mxu0 0
  %248 = vmatmul.mubr.bf16.gmra.mxu0 %v154
  %v249 = vpop.f32.mrf.mxu0
  %v250 = vadd.f32 0.0, %v249
  %v251 = vpop.f32.mrf.mxu0
  %v252 = vpop.f32.mrf.mxu0
  %v253 = vadd.f32 0.0, %v252
  %v254 = vpop.f32.mrf.mxu0
  %255 = vmatprep.mubr.bf16.mxu0 0
  %256 = vmatmul.mubr.bf16.gmra.mxu0 %v157
  %v257 = vpop.f32.mrf.mxu0
  %v258 = vadd.f32 0.0, %v257
  %v259 = vpop.f32.mrf.mxu0
  %v260 = vpop.f32.mrf.mxu0
  %v261 = vadd.f32 0.0, %v260
  %v262 = vpop.f32.mrf.mxu0
  %263 = vmatprep.mubr.bf16.mxu0 0
  %264 = vmatmul.mubr.bf16.gmra.mxu0 %v160
  %v265 = vpop.f32.mrf.mxu0
  %v266 = vadd.f32 0.0, %v265
  %v267 = vpop.f32.mrf.mxu0
  %v268 = vpop.f32.mrf.mxu0
  %v269 = vadd.f32 0.0, %v268
  %v270 = vpop.f32.mrf.mxu0
  %271 = vmatprep.mubr.bf16.mxu0 0
  %272 = vmatmul.mubr.bf16.gmra.mxu0 %v163
  %v273 = vpop.f32.mrf.mxu0
  %v274 = vadd.f32 0.0, %v273
  %v275 = vpop.f32.mrf.mxu0
  %v276 = vpop.f32.mrf.mxu0
  %v277 = vadd.f32 0.0, %v276
  %v278 = vpop.f32.mrf.mxu0
  %279 = vmatprep.mubr.bf16.mxu0 0
  %280 = vmatmul.mubr.bf16.gmra.mxu0 %v166
  %v281 = vpop.f32.mrf.mxu0
  %v282 = vadd.f32 0.0, %v281
  %v283 = vpop.f32.mrf.mxu0
  %v284 = vpop.f32.mrf.mxu0
  %v285 = vadd.f32 0.0, %v284
  %v286 = vpop.f32.mrf.mxu0
  %287 = vmatprep.mubr.bf16.mxu0 0
  %288 = vmatmul.mubr.bf16.gmra.mxu0 %v169
  %v289 = vpop.f32.mrf.mxu0
  %v290 = vadd.f32 0.0, %v289
  %v291 = vpop.f32.mrf.mxu0
  %v292 = vpop.f32.mrf.mxu0
  %v293 = vadd.f32 0.0, %v292
  %v294 = vpop.f32.mrf.mxu0
  %295 = vmatprep.mubr.bf16.mxu0 0
  %296 = vmatmul.mubr.bf16.gmra.mxu0 %v172
  %v297 = vpop.f32.mrf.mxu0
  %v298 = vadd.f32 0.0, %v297
  %v299 = vpop.f32.mrf.mxu0
  %v300 = vpop.f32.mrf.mxu0
  %v301 = vadd.f32 0.0, %v300
  %v302 = vpop.f32.mrf.mxu0
  %303 = vmatprep.mubr.bf16.mxu0 0
  %304 = vmatmul.mubr.bf16.gmra.mxu0 %v175
  %v305 = vpop.f32.mrf.mxu0
  %v306 = vadd.f32 0.0, %v305
  %v307 = vpop.f32.mrf.mxu0
  %v308 = vpop.f32.mrf.mxu0
  %v309 = vadd.f32 0.0, %v308
  %v310 = vpop.f32.mrf.mxu0
  %311 = vmatprep.mubr.bf16.mxu0 0
  %312 = vmatmul.mubr.bf16.gmra.mxu0 %v178
  %v313 = vpop.f32.mrf.mxu0
  %v314 = vadd.f32 0.0, %v313
  %v315 = vpop.f32.mrf.mxu0
  %v316 = vpop.f32.mrf.mxu0
  %v317 = vadd.f32 0.0, %v316
  %v318 = vpop.f32.mrf.mxu0
  %319 = vmatprep.mubr.bf16.mxu0 0
  %320 = vmatmul.mubr.bf16.gmra.mxu0 %v181
  %v321 = vpop.f32.mrf.mxu0
  %v322 = vadd.f32 0.0, %v321
  %v323 = vpop.f32.mrf.mxu0
  %v324 = vpop.f32.mrf.mxu0
  %v325 = vadd.f32 0.0, %v324
  %v326 = vpop.f32.mrf.mxu0
  %327 = vmatprep.mubr.bf16.mxu0 0
  %328 = vmatmul.mubr.bf16.gmra.mxu0 %v184
  %v329 = vpop.f32.mrf.mxu0
  %v330 = vadd.f32 0.0, %v329
  %v331 = vpop.f32.mrf.mxu0
  %v332 = vpop.f32.mrf.mxu0
  %v333 = vadd.f32 0.0, %v332
  %v334 = vpop.f32.mrf.mxu0
  %335 = vmatprep.mubr.bf16.mxu0 0
  %336 = vmatmul.mubr.bf16.gmra.mxu0 %v187
  %v337 = vpop.f32.mrf.mxu0
  %v338 = vadd.f32 0.0, %v337
  %v339 = vpop.f32.mrf.mxu0
  %v340 = vpop.f32.mrf.mxu0
  %v341 = vadd.f32 0.0, %v340
  %v342 = vpop.f32.mrf.mxu0
  %343 = vmatprep.mubr.bf16.mxu0 0
  %344 = vmatmul.mubr.bf16.gmra.mxu0 %v190
  %v345 = vpop.f32.mrf.mxu0
  %v346 = vadd.f32 0.0, %v345
  %v347 = vpop.f32.mrf.mxu0
  %v348 = vpop.f32.mrf.mxu0
  %v349 = vadd.f32 0.0, %v348
  %v350 = vpop.f32.mrf.mxu0
  %351 = vmatprep.mubr.bf16.mxu0 0
  %352 = vmatmul.mubr.bf16.gmra.mxu0 %v193
  %v353 = vpop.f32.mrf.mxu0
  %v354 = vadd.f32 0.0, %v353
  %v355 = vpop.f32.mrf.mxu0
  %v356 = vpop.f32.mrf.mxu0
  %v357 = vadd.f32 0.0, %v356
  %v358 = vpop.f32.mrf.mxu0
  %359 = vdwg.mxu0
  %v360 = vpack.c.bf16 %v237, %v234
  %v361 = vpack.c.bf16 %v245, %v242
  %v362 = vpack.c.bf16 %v253, %v250
  %v363 = vpack.c.bf16 %v261, %v258
  %v364 = vpack.c.bf16 %v269, %v266
  %v365 = vpack.c.bf16 %v277, %v274
  %v366 = vpack.c.bf16 %v285, %v282
  %v367 = vpack.c.bf16 %v293, %v290
  %v368 = vpack.c.bf16 %v301, %v298
  %v369 = vpack.c.bf16 %v309, %v306
  %v370 = vpack.c.bf16 %v317, %v314
  %v371 = vpack.c.bf16 %v325, %v322
  %v372 = vpack.c.bf16 %v333, %v330
  %v373 = vpack.c.bf16 %v341, %v338
  %v374 = vpack.c.bf16 %v349, %v346
  %v375 = vpack.c.bf16 %v357, %v354
  %v392 = vunpack.c.l.b16 %v360
  %v393 = vunpack.c.h.b16 %v360
  %v394 = vunpack.c.l.b16 %v361
  %v395 = vunpack.c.h.b16 %v361
  %v396 = vunpack.c.l.b16 %v362
  %v397 = vunpack.c.h.b16 %v362
  %v398 = vunpack.c.l.b16 %v363
  %v399 = vunpack.c.h.b16 %v363
  %v400 = vunpack.c.l.b16 %v364
  %v401 = vunpack.c.h.b16 %v364
  %v402 = vunpack.c.l.b16 %v365
  %v403 = vunpack.c.h.b16 %v365
  %v404 = vunpack.c.l.b16 %v366
  %v405 = vunpack.c.h.b16 %v366
  %v406 = vunpack.c.l.b16 %v367
  %v407 = vunpack.c.h.b16 %v367
  %v408 = vunpack.c.l.b16 %v368
  %v409 = vunpack.c.h.b16 %v368
  %v410 = vunpack.c.l.b16 %v369
  %v411 = vunpack.c.h.b16 %v369
  %v412 = vunpack.c.l.b16 %v370
  %v413 = vunpack.c.h.b16 %v370
  %v414 = vunpack.c.l.b16 %v371
  %v415 = vunpack.c.h.b16 %v371
  %v416 = vunpack.c.l.b16 %v372
  %v417 = vunpack.c.h.b16 %v372
  %v418 = vunpack.c.l.b16 %v373
  %v419 = vunpack.c.h.b16 %v373
  %v420 = vunpack.c.l.b16 %v374
  %v421 = vunpack.c.h.b16 %v374
  %v422 = vunpack.c.l.b16 %v375
  %v423 = vunpack.c.h.b16 %v375
  %v424 = vpack.c.b16 %v392, %v392
  %v425 = vpack.c.b16 %v393, %v393
  %v426 = vpack.c.b16 %v394, %v394
  %v427 = vpack.c.b16 %v395, %v395
  %v428 = vpack.c.b16 %v396, %v396
  %v429 = vpack.c.b16 %v397, %v397
  %v430 = vpack.c.b16 %v398, %v398
  %v431 = vpack.c.b16 %v399, %v399
  %v432 = vpack.c.b16 %v400, %v400
  %v433 = vpack.c.b16 %v401, %v401
  %v434 = vpack.c.b16 %v402, %v402
  %v435 = vpack.c.b16 %v403, %v403
  %v436 = vpack.c.b16 %v404, %v404
  %v437 = vpack.c.b16 %v405, %v405
  %v438 = vpack.c.b16 %v406, %v406
  %v439 = vpack.c.b16 %v407, %v407
  %v440 = vpack.c.b16 %v408, %v408
  %v441 = vpack.c.b16 %v409, %v409
  %v442 = vpack.c.b16 %v410, %v410
  %v443 = vpack.c.b16 %v411, %v411
  %v444 = vpack.c.b16 %v412, %v412
  %v445 = vpack.c.b16 %v413, %v413
  %v446 = vpack.c.b16 %v414, %v414
  %v447 = vpack.c.b16 %v415, %v415
  %v448 = vpack.c.b16 %v416, %v416
  %v449 = vpack.c.b16 %v417, %v417
  %v450 = vpack.c.b16 %v418, %v418
  %v451 = vpack.c.b16 %v419, %v419
  %v452 = vpack.c.b16 %v420, %v420
  %v453 = vpack.c.b16 %v421, %v421
  %v454 = vpack.c.b16 %v422, %v422
  %v455 = vpack.c.b16 %v423, %v423
  %488 = vst [vmem:[%s2] sm:$0xf] %v424
  %489 = vst [vmem:[%s2 + $0x4] sm:$0xf] %v425
  %490 = vst [vmem:[%s2 + $0x8] sm:$0xf] %v426
  %491 = vst [vmem:[%s2 + $0xc] sm:$0xf] %v427
  %492 = vst [vmem:[%s2 + $0x10] sm:$0xf] %v428
  %493 = vst [vmem:[%s2 + $0x14] sm:$0xf] %v429
  %494 = vst [vmem:[%s2 + $0x18] sm:$0xf] %v430
  %495 = vst [vmem:[%s2 + $0x1c] sm:$0xf] %v431
  %496 = vst [vmem:[%s2 + $0x20] sm:$0xf] %v432
  %497 = vst [vmem:[%s2 + $0x24] sm:$0xf] %v433
  %498 = vst [vmem:[%s2 + $0x28] sm:$0xf] %v434
  %499 = vst [vmem:[%s2 + $0x2c] sm:$0xf] %v435
  %500 = vst [vmem:[%s2 + $0x30] sm:$0xf] %v436
  %501 = vst [vmem:[%s2 + $0x34] sm:$0xf] %v437
  %502 = vst [vmem:[%s2 + $0x38] sm:$0xf] %v438
  %503 = vst [vmem:[%s2 + $0x3c] sm:$0xf] %v439
  %504 = vst [vmem:[%s2 + $0x40] sm:$0xf] %v440
  %505 = vst [vmem:[%s2 + $0x44] sm:$0xf] %v441
  %506 = vst [vmem:[%s2 + $0x48] sm:$0xf] %v442
  %507 = vst [vmem:[%s2 + $0x4c] sm:$0xf] %v443
  %508 = vst [vmem:[%s2 + $0x50] sm:$0xf] %v444
  %509 = vst [vmem:[%s2 + $0x54] sm:$0xf] %v445
  %510 = vst [vmem:[%s2 + $0x58] sm:$0xf] %v446
  %511 = vst [vmem:[%s2 + $0x5c] sm:$0xf] %v447
  %512 = vst [vmem:[%s2 + $0x60] sm:$0xf] %v448
  %513 = vst [vmem:[%s2 + $0x64] sm:$0xf] %v449
  %514 = vst [vmem:[%s2 + $0x68] sm:$0xf] %v450
  %515 = vst [vmem:[%s2 + $0x6c] sm:$0xf] %v451
  %516 = vst [vmem:[%s2 + $0x70] sm:$0xf] %v452
  %517 = vst [vmem:[%s2 + $0x74] sm:$0xf] %v453
  %518 = vst [vmem:[%s2 + $0x78] sm:$0xf] %v454
  %519 = vst [vmem:[%s2 + $0x7c] sm:$0xf] %v455
  %v520 = vunpack.c.l.bf16 %v360
  %v521 = vunpack.c.h.bf16 %v360
  %v522 = vunpack.c.l.bf16 %v361
  %v523 = vunpack.c.h.bf16 %v361
  %v524 = vunpack.c.l.bf16 %v362
  %v525 = vunpack.c.h.bf16 %v362
  %v526 = vunpack.c.l.bf16 %v363
  %v527 = vunpack.c.h.bf16 %v363
  %v528 = vunpack.c.l.bf16 %v364
  %v529 = vunpack.c.h.bf16 %v364
  %v530 = vunpack.c.l.bf16 %v365
  %v531 = vunpack.c.h.bf16 %v365
  %v532 = vunpack.c.l.bf16 %v366
  %v533 = vunpack.c.h.bf16 %v366
  %v534 = vunpack.c.l.bf16 %v367
  %v535 = vunpack.c.h.bf16 %v367
  %v536 = vunpack.c.l.bf16 %v368
  %v537 = vunpack.c.h.bf16 %v368
  %v538 = vunpack.c.l.bf16 %v369
  %v539 = vunpack.c.h.bf16 %v369
  %v540 = vunpack.c.l.bf16 %v370
  %v541 = vunpack.c.h.bf16 %v370
  %v542 = vunpack.c.l.bf16 %v371
  %v543 = vunpack.c.h.bf16 %v371
  %v544 = vunpack.c.l.bf16 %v372
  %v545 = vunpack.c.h.bf16 %v372
  %v546 = vunpack.c.l.bf16 %v373
  %v547 = vunpack.c.h.bf16 %v373
  %v548 = vunpack.c.l.bf16 %v374
  %v549 = vunpack.c.h.bf16 %v374
  %v550 = vunpack.c.l.bf16 %v375
  %v551 = vunpack.c.h.bf16 %v375
  %v552 = vadd.f32 %v520, %v521
  %v553 = vadd.f32 %v552, %v522
  %v554 = vadd.f32 %v553, %v523
  %v555 = vadd.f32 %v554, %v524
  %v556 = vadd.f32 %v555, %v525
  %v557 = vadd.f32 %v556, %v526
  %v558 = vadd.f32 %v557, %v527
  %v559 = vadd.f32 %v558, %v528
  %v560 = vadd.f32 %v559, %v529
  %v561 = vadd.f32 %v560, %v530
  %v562 = vadd.f32 %v561, %v531
  %v563 = vadd.f32 %v562, %v532
  %v564 = vadd.f32 %v563, %v533
  %v565 = vadd.f32 %v564, %v534
  %v566 = vadd.f32 %v565, %v535
  %v567 = vadd.f32 %v566, %v536
  %v568 = vadd.f32 %v567, %v537
  %v569 = vadd.f32 %v568, %v538
  %v570 = vadd.f32 %v569, %v539
  %v571 = vadd.f32 %v570, %v540
  %v572 = vadd.f32 %v571, %v541
  %v573 = vadd.f32 %v572, %v542
  %v574 = vadd.f32 %v573, %v543
  %v575 = vadd.f32 %v574, %v544
  %v576 = vadd.f32 %v575, %v545
  %v577 = vadd.f32 %v576, %v546
  %v578 = vadd.f32 %v577, %v547
  %v579 = vadd.f32 %v578, %v548
  %v580 = vadd.f32 %v579, %v549
  %v581 = vadd.f32 %v580, %v550
  %v582 = vadd.f32 %v581, %v551
  %v583 = vrot.slane %v582, 4
  %v584 = vadd.f32 %v582, %v583
  %v585 = vrot.slane %v584, 2
  %v586 = vadd.f32 %v584, %v585
  %v587 = vrot.slane %v586, 1
  %v588 = vadd.f32 %v586, %v587
  %v589 = vmul.f32 %v520, %v520
  %v590 = vmul.f32 %v521, %v521
  %v591 = vmul.f32 %v522, %v522
  %v592 = vmul.f32 %v523, %v523
  %v593 = vmul.f32 %v524, %v524
  %v594 = vmul.f32 %v525, %v525
  %v595 = vmul.f32 %v526, %v526
  %v596 = vmul.f32 %v527, %v527
  %v597 = vmul.f32 %v528, %v528
  %v598 = vmul.f32 %v529, %v529
  %v599 = vmul.f32 %v530, %v530
  %v600 = vmul.f32 %v531, %v531
  %v601 = vmul.f32 %v532, %v532
  %v602 = vmul.f32 %v533, %v533
  %v603 = vmul.f32 %v534, %v534
  %v604 = vmul.f32 %v535, %v535
  %v605 = vmul.f32 %v536, %v536
  %v606 = vmul.f32 %v537, %v537
  %v607 = vmul.f32 %v538, %v538
  %v608 = vmul.f32 %v539, %v539
  %v609 = vmul.f32 %v540, %v540
  %v610 = vmul.f32 %v541, %v541
  %v611 = vmul.f32 %v542, %v542
  %v612 = vmul.f32 %v543, %v543
  %v613 = vmul.f32 %v544, %v544
  %v614 = vmul.f32 %v545, %v545
  %v615 = vmul.f32 %v546, %v546
  %v616 = vmul.f32 %v547, %v547
  %v617 = vmul.f32 %v548, %v548
  %v618 = vmul.f32 %v549, %v549
  %v619 = vmul.f32 %v550, %v550
  %v620 = vmul.f32 %v551, %v551
  %v621 = vadd.f32 %v589, %v590
  %v622 = vadd.f32 %v621, %v591
  %v623 = vadd.f32 %v622, %v592
  %v624 = vadd.f32 %v623, %v593
  %v625 = vadd.f32 %v624, %v594
  %v626 = vadd.f32 %v625, %v595
  %v627 = vadd.f32 %v626, %v596
  %v628 = vadd.f32 %v627, %v597
  %v629 = vadd.f32 %v628, %v598
  %v630 = vadd.f32 %v629, %v599
  %v631 = vadd.f32 %v630, %v600
  %v632 = vadd.f32 %v631, %v601
  %v633 = vadd.f32 %v632, %v602
  %v634 = vadd.f32 %v633, %v603
  %v635 = vadd.f32 %v634, %v604
  %v636 = vadd.f32 %v635, %v605
  %v637 = vadd.f32 %v636, %v606
  %v638 = vadd.f32 %v637, %v607
  %v639 = vadd.f32 %v638, %v608
  %v640 = vadd.f32 %v639, %v609
  %v641 = vadd.f32 %v640, %v610
  %v642 = vadd.f32 %v641, %v611
  %v643 = vadd.f32 %v642, %v612
  %v644 = vadd.f32 %v643, %v613
  %v645 = vadd.f32 %v644, %v614
  %v646 = vadd.f32 %v645, %v615
  %v647 = vadd.f32 %v646, %v616
  %v648 = vadd.f32 %v647, %v617
  %v649 = vadd.f32 %v648, %v618
  %v650 = vadd.f32 %v649, %v619
  %v651 = vadd.f32 %v650, %v620
  %v652 = vrot.slane %v651, 4
  %v653 = vadd.f32 %v651, %v652
  %v654 = vrot.slane %v653, 2
  %v655 = vadd.f32 %v653, %v654
  %v656 = vrot.slane %v655, 1
  %v657 = vadd.f32 %v655, %v656
  %v658 = vlaneseq
  %v659 = vshrl.u32 %v658, 7
  %vm660 = vcmp.eq.s32.totalorder %v659, 0
  %v661 = vsel %vm660, %v588, 0.0
  %vm662 = vcmp.eq.s32.totalorder %v659, 1
  %v663 = vsel %vm662, %v657, 0.0
  %v664 = vadd.f32 %v661, %v663
  %665 = vst [vmem:[%s3] sm:$0xff] %v664
  // Predicated region
  $region10: #{preact_block_forward.4} parent=0 // pred_check
    _
  $region11: #{preact_block_forward.4} parent=0 // pred_check_branch
    %667 = sbr.rel (0) target = $region13
  $region12: #{preact_block_forward.4} parent=0 // pred_region
    _
  $region13: #{preact_block_forward.4} parent=0 // pred_fallthru
    _
  // Predicated region
  $region14: #{preact_block_forward.4} parent=0 // pred_check
    _
  $region15: #{preact_block_forward.4} parent=0 // pred_check_branch
    %669 = sbr.rel (0) target = $region17
  $region16: #{preact_block_forward.4} parent=0 // pred_region
    _
  $region17: #{preact_block_forward.4} parent=0 // pred_fallthru
    _
  // Predicated region
  $region18: #{preact_block_forward.4} parent=0 // pred_check
    _
  $region19: #{preact_block_forward.4} parent=0 // pred_check_branch
    %671 = sbr.rel (0) target = $region21
  $region20: #{preact_block_forward.4} parent=0 // pred_region
    _
  $region21: #{preact_block_forward.4} parent=0 // pred_fallthru
    _
  // Predicated region
  $region22: #{preact_block_forward.4} parent=0 // pred_check
    _
  $region23: #{preact_block_forward.4} parent=0 // pred_check_branch
    %673 = sbr.rel (0) target = $region25
  $region24: #{preact_block_forward.4} parent=0 // pred_region
    _
  $region25: #{preact_block_forward.4} parent=0 // pred_fallthru
    _

// kernel: preact_block_forward.6
$region0: #{preact_block_forward.6}
  #allocation0 [shape = 'u32[]', space=smem, size = 0x4, offset = 0x4, fixed_abs, tag = 'smem constant byte address 0x4 - core index']
  #allocation1 [shape = 'u32[144,128]{1,0:T(1,128)}', space=vmem, size = 0x12000, scoped, tag = 'internal scratch']
  %s0 = inlined_call_operand.vmem [shape: bf16[256,72], index: 0, kind: input, shape index: {}]
  %s1 = inlined_call_operand.vmem [shape: bf16[72,128], index: 1, kind: input, shape index: {}]
  %s2 = inlined_call_operand.vmem [shape: f32[256,128], index: 2, kind: output, shape index: {0}]
  %s3 = inlined_call_operand.vmem [shape: f32[8,128], index: 3, kind: output, shape index: {1}]
  %4 = xla_tuple %s2, %s3
  %s5 = sld [smem:[#allocation0]]
  $region26: #{preact_block_forward.6} parent=0
    _
  %s7 = ssub.s32 1, %s5
  %s8 = scalar_select 0, %s7, %s5
  // Predicated region
  $region2: #{preact_block_forward.6} parent=0 // pred_check
    _
  $region3: #{preact_block_forward.6} parent=0 // pred_check_branch
    %10 = sbr.rel (0) target = $region5
  $region4: #{preact_block_forward.6} parent=0 // pred_region
    _
  $region5: #{preact_block_forward.6} parent=0 // pred_fallthru
    _
  // Predicated region
  $region6: #{preact_block_forward.6} parent=0 // pred_check
    _
  $region7: #{preact_block_forward.6} parent=0 // pred_check_branch
    %12 = sbr.rel (0) target = $region9
  $region8: #{preact_block_forward.6} parent=0 // pred_region
    _
  $region9: #{preact_block_forward.6} parent=0 // pred_fallthru
    _
  %v14 = vld [vmem:[%s0] sm:$0xf]
  %v15 = vld [vmem:[%s0 + $0x4] sm:$0xf]
  %v16 = vld [vmem:[%s0 + $0x8] sm:$0xf]
  %v17 = vld [vmem:[%s0 + $0xc] sm:$0xf]
  %v18 = vld [vmem:[%s0 + $0x10] sm:$0xf]
  %v19 = vld [vmem:[%s0 + $0x14] sm:$0xf]
  %v20 = vld [vmem:[%s0 + $0x18] sm:$0xf]
  %v21 = vld [vmem:[%s0 + $0x1c] sm:$0xf]
  %v22 = vld [vmem:[%s0 + $0x20] sm:$0xf]
  %v23 = vld [vmem:[%s0 + $0x24] sm:$0xf]
  %v24 = vld [vmem:[%s0 + $0x28] sm:$0xf]
  %v25 = vld [vmem:[%s0 + $0x2c] sm:$0xf]
  %v26 = vld [vmem:[%s0 + $0x30] sm:$0xf]
  %v27 = vld [vmem:[%s0 + $0x34] sm:$0xf]
  %v28 = vld [vmem:[%s0 + $0x38] sm:$0xf]
  %v29 = vld [vmem:[%s0 + $0x3c] sm:$0xf]
  %v30 = vld [vmem:[%s0 + $0x40] sm:$0xf]
  %v31 = vld [vmem:[%s0 + $0x44] sm:$0xf]
  %v32 = vld [vmem:[%s0 + $0x48] sm:$0xf]
  %v33 = vld [vmem:[%s0 + $0x4c] sm:$0xf]
  %v34 = vld [vmem:[%s0 + $0x50] sm:$0xf]
  %v35 = vld [vmem:[%s0 + $0x54] sm:$0xf]
  %v36 = vld [vmem:[%s0 + $0x58] sm:$0xf]
  %v37 = vld [vmem:[%s0 + $0x5c] sm:$0xf]
  %v38 = vld [vmem:[%s0 + $0x60] sm:$0xf]
  %v39 = vld [vmem:[%s0 + $0x64] sm:$0xf]
  %v40 = vld [vmem:[%s0 + $0x68] sm:$0xf]
  %v41 = vld [vmem:[%s0 + $0x6c] sm:$0xf]
  %v42 = vld [vmem:[%s0 + $0x70] sm:$0xf]
  %v43 = vld [vmem:[%s0 + $0x74] sm:$0xf]
  %v44 = vld [vmem:[%s0 + $0x78] sm:$0xf]
  %v45 = vld [vmem:[%s0 + $0x7c] sm:$0xf]
  %v46 = vld [vmem:[%s1] sm:$0xf]
  %v47 = vld [vmem:[%s1 + $0x4] sm:$0xf]
  %v48 = vld [vmem:[%s1 + $0x8] sm:$0xf]
  %v49 = vld [vmem:[%s1 + $0xc] sm:$0xf]
  %v50 = vld [vmem:[%s1 + $0x10] sm:$0xf]
  %v51 = vld [vmem:[%s1 + $0x14] sm:$0xf]
  %v52 = vld [vmem:[%s1 + $0x18] sm:$0xf]
  %v53 = vld [vmem:[%s1 + $0x1c] sm:$0xf]
  %v54 = vld [vmem:[%s1 + $0x20] sm:$0xf]
  %v87 = vunpack.c.l.b16 %v14
  %v88 = vunpack.c.l.b16 %v15
  %v89 = vunpack.c.l.b16 %v16
  %v90 = vunpack.c.l.b16 %v17
  %v91 = vunpack.c.l.b16 %v18
  %v92 = vunpack.c.l.b16 %v19
  %v93 = vunpack.c.l.b16 %v20
  %v94 = vunpack.c.l.b16 %v21
  %v95 = vunpack.c.l.b16 %v22
  %v96 = vunpack.c.l.b16 %v23
  %v97 = vunpack.c.l.b16 %v24
  %v98 = vunpack.c.l.b16 %v25
  %v99 = vunpack.c.l.b16 %v26
  %v100 = vunpack.c.l.b16 %v27
  %v101 = vunpack.c.l.b16 %v28
  %v102 = vunpack.c.l.b16 %v29
  %v103 = vunpack.c.l.b16 %v30
  %v104 = vunpack.c.l.b16 %v31
  %v105 = vunpack.c.l.b16 %v32
  %v106 = vunpack.c.l.b16 %v33
  %v107 = vunpack.c.l.b16 %v34
  %v108 = vunpack.c.l.b16 %v35
  %v109 = vunpack.c.l.b16 %v36
  %v110 = vunpack.c.l.b16 %v37
  %v111 = vunpack.c.l.b16 %v38
  %v112 = vunpack.c.l.b16 %v39
  %v113 = vunpack.c.l.b16 %v40
  %v114 = vunpack.c.l.b16 %v41
  %v115 = vunpack.c.l.b16 %v42
  %v116 = vunpack.c.l.b16 %v43
  %v117 = vunpack.c.l.b16 %v44
  %v118 = vunpack.c.l.b16 %v45
  %v119 = vpack.c.b16 %v88, %v87
  %v120 = vpack.c.b16 %v90, %v89
  %v121 = vpack.c.b16 %v92, %v91
  %v122 = vpack.c.b16 %v94, %v93
  %v123 = vpack.c.b16 %v96, %v95
  %v124 = vpack.c.b16 %v98, %v97
  %v125 = vpack.c.b16 %v100, %v99
  %v126 = vpack.c.b16 %v102, %v101
  %v127 = vpack.c.b16 %v104, %v103
  %v128 = vpack.c.b16 %v106, %v105
  %v129 = vpack.c.b16 %v108, %v107
  %v130 = vpack.c.b16 %v110, %v109
  %v131 = vpack.c.b16 %v112, %v111
  %v132 = vpack.c.b16 %v114, %v113
  %v133 = vpack.c.b16 %v116, %v115
  %v134 = vpack.c.b16 %v118, %v117
  %v144 = vunpack.c.l.b16 %v46
  %v145 = vunpack.c.l.b16 %v47
  %v146 = vunpack.c.l.b16 %v48
  %v147 = vunpack.c.l.b16 %v49
  %v148 = vunpack.c.l.b16 %v50
  %v149 = vunpack.c.l.b16 %v51
  %v150 = vunpack.c.l.b16 %v52
  %v151 = vunpack.c.l.b16 %v53
  %v152 = vunpack.c.l.b16 %v54
  %v153 = vpack.c.b16 %v145, %v144
  %v154 = vpack.c.b16 %v147, %v146
  %v155 = vpack.c.b16 %v149, %v148
  %v156 = vpack.c.b16 %v151, %v150
  %v157 = vpack.c.b16 %v152, %v152
  %vm162 = vcmask 588800
  %v164 = vsel %vm162, %v119, 0
  %v167 = vsel %vm162, %v120, 0
  %v170 = vsel %vm162, %v121, 0
  %v173 = vsel %vm162, %v122, 0
  %v176 = vsel %vm162, %v123, 0
  %v179 = vsel %vm162, %v124, 0
  %v182 = vsel %vm162, %v125, 0
  %v185 = vsel %vm162, %v126, 0
  %v188 = vsel %vm162, %v127, 0
  %v191 = vsel %vm162, %v128, 0
  %v194 = vsel %vm162, %v129, 0
  %v197 = vsel %vm162, %v130, 0
  %v200 = vsel %vm162, %v131, 0
  %v203 = vsel %vm162, %v132, 0
  %v206 = vsel %vm162, %v133, 0
  %v209 = vsel %vm162, %v134, 0
  %vm211 = vcmask 1043456
  %v213 = vsel %vm211, %v157, 0
  %215 = vmatprep.subr.bf16.mxu0 0
  %216 = vmatpush1.bf16.msra.mxu0 0
  %217 = vmatprep.subr.bf16.mxu0 0
  %218 = vmatpush1.bf16.msra.mxu0 0
  %219 = vmatprep.subr.bf16.mxu0 0
  %220 = vmatpush1.bf16.msra.mxu0 0
  %221 = vmatprep.subr.bf16.mxu0 0
  %222 = vmatpush1.bf16.msra.mxu0 %v213
  %223 = vmatprep.subr.bf16.mxu0 0
  %224 = vmatpush1.bf16.msra.mxu0 %v156
  %225 = vmatprep.subr.bf16.mxu0 0
  %226 = vmatpush1.bf16.msra.mxu0 %v155
  %227 = vmatprep.subr.bf16.mxu0 0
  %228 = vmatpush1.bf16.msra.mxu0 %v154
  %229 = vmatprep.subr.bf16.mxu0 0
  %230 = vmatpush1.bf16.msra.mxu0 %v153
  %231 = vmatprep.subr.bf16.mxu0 0
  %232 = vmatpush2.bf16.msra.mxu0 0
  %233 = vmatprep.subr.bf16.mxu0 0
  %234 = vmatpush2.bf16.msra.mxu0 0
  %235 = vmatprep.subr.bf16.mxu0 0
  %236 = vmatpush2.bf16.msra.mxu0 0
  %237 = vmatprep.subr.bf16.mxu0 0
  %238 = vmatpush2.bf16.msra.mxu0 0
  %239 = vmatprep.subr.bf16.mxu0 0
  %240 = vmatpush2.bf16.msra.mxu0 0
  %241 = vmatprep.subr.bf16.mxu0 0
  %242 = vmatpush2.bf16.msra.mxu0 0
  %243 = vmatprep.subr.bf16.mxu0 0
  %244 = vmatpush2.bf16.msra.mxu0 0
  %245 = vmatprep.subr.bf16.mxu0 0
  %246 = vmatpush2.bf16.msra.mxu0 0
  %247 = vmatprep.mubr.bf16.mxu0 0
  %248 = vmatmul.mubr.bf16.gmra.mxu0 %v164
  %v249 = vpop.f32.mrf.mxu0
  %v250 = vadd.f32 0.0, %v249
  %v251 = vpop.f32.mrf.mxu0
  %v252 = vpop.f32.mrf.mxu0
  %v253 = vadd.f32 0.0, %v252
  %v254 = vpop.f32.mrf.mxu0
  %255 = vmatprep.mubr.bf16.mxu0 0
  %256 = vmatmul.mubr.bf16.gmra.mxu0 %v167
  %v257 = vpop.f32.mrf.mxu0
  %v258 = vadd.f32 0.0, %v257
  %v259 = vpop.f32.mrf.mxu0
  %v260 = vpop.f32.mrf.mxu0
  %v261 = vadd.f32 0.0, %v260
  %v262 = vpop.f32.mrf.mxu0
  %263 = vmatprep.mubr.bf16.mxu0 0
  %264 = vmatmul.mubr.bf16.gmra.mxu0 %v170
  %v265 = vpop.f32.mrf.mxu0
  %v266 = vadd.f32 0.0, %v265
  %v267 = vpop.f32.mrf.mxu0
  %v268 = vpop.f32.mrf.mxu0
  %v269 = vadd.f32 0.0, %v268
  %v270 = vpop.f32.mrf.mxu0
  %271 = vmatprep.mubr.bf16.mxu0 0
  %272 = vmatmul.mubr.bf16.gmra.mxu0 %v173
  %v273 = vpop.f32.mrf.mxu0
  %v274 = vadd.f32 0.0, %v273
  %v275 = vpop.f32.mrf.mxu0
  %v276 = vpop.f32.mrf.mxu0
  %v277 = vadd.f32 0.0, %v276
  %v278 = vpop.f32.mrf.mxu0
  %279 = vmatprep.mubr.bf16.mxu0 0
  %280 = vmatmul.mubr.bf16.gmra.mxu0 %v176
  %v281 = vpop.f32.mrf.mxu0
  %v282 = vadd.f32 0.0, %v281
  %v283 = vpop.f32.mrf.mxu0
  %v284 = vpop.f32.mrf.mxu0
  %v285 = vadd.f32 0.0, %v284
  %v286 = vpop.f32.mrf.mxu0
  %287 = vmatprep.mubr.bf16.mxu0 0
  %288 = vmatmul.mubr.bf16.gmra.mxu0 %v179
  %v289 = vpop.f32.mrf.mxu0
  %v290 = vadd.f32 0.0, %v289
  %v291 = vpop.f32.mrf.mxu0
  %v292 = vpop.f32.mrf.mxu0
  %v293 = vadd.f32 0.0, %v292
  %v294 = vpop.f32.mrf.mxu0
  %295 = vmatprep.mubr.bf16.mxu0 0
  %296 = vmatmul.mubr.bf16.gmra.mxu0 %v182
  %v297 = vpop.f32.mrf.mxu0
  %v298 = vadd.f32 0.0, %v297
  %v299 = vpop.f32.mrf.mxu0
  %v300 = vpop.f32.mrf.mxu0
  %v301 = vadd.f32 0.0, %v300
  %v302 = vpop.f32.mrf.mxu0
  %303 = vmatprep.mubr.bf16.mxu0 0
  %304 = vmatmul.mubr.bf16.gmra.mxu0 %v185
  %v305 = vpop.f32.mrf.mxu0
  %v306 = vadd.f32 0.0, %v305
  %v307 = vpop.f32.mrf.mxu0
  %v308 = vpop.f32.mrf.mxu0
  %v309 = vadd.f32 0.0, %v308
  %v310 = vpop.f32.mrf.mxu0
  %311 = vmatprep.mubr.bf16.mxu0 0
  %312 = vmatmul.mubr.bf16.gmra.mxu0 %v188
  %v313 = vpop.f32.mrf.mxu0
  %v314 = vadd.f32 0.0, %v313
  %v315 = vpop.f32.mrf.mxu0
  %v316 = vpop.f32.mrf.mxu0
  %v317 = vadd.f32 0.0, %v316
  %v318 = vpop.f32.mrf.mxu0
  %319 = vmatprep.mubr.bf16.mxu0 0
  %320 = vmatmul.mubr.bf16.gmra.mxu0 %v191
  %v321 = vpop.f32.mrf.mxu0
  %v322 = vadd.f32 0.0, %v321
  %v323 = vpop.f32.mrf.mxu0
  %v324 = vpop.f32.mrf.mxu0
  %v325 = vadd.f32 0.0, %v324
  %v326 = vpop.f32.mrf.mxu0
  %327 = vmatprep.mubr.bf16.mxu0 0
  %328 = vmatmul.mubr.bf16.gmra.mxu0 %v194
  %v329 = vpop.f32.mrf.mxu0
  %v330 = vadd.f32 0.0, %v329
  %v331 = vpop.f32.mrf.mxu0
  %v332 = vpop.f32.mrf.mxu0
  %v333 = vadd.f32 0.0, %v332
  %v334 = vpop.f32.mrf.mxu0
  %335 = vmatprep.mubr.bf16.mxu0 0
  %336 = vmatmul.mubr.bf16.gmra.mxu0 %v197
  %v337 = vpop.f32.mrf.mxu0
  %v338 = vadd.f32 0.0, %v337
  %v339 = vpop.f32.mrf.mxu0
  %v340 = vpop.f32.mrf.mxu0
  %v341 = vadd.f32 0.0, %v340
  %v342 = vpop.f32.mrf.mxu0
  %343 = vmatprep.mubr.bf16.mxu0 0
  %344 = vmatmul.mubr.bf16.gmra.mxu0 %v200
  %v345 = vpop.f32.mrf.mxu0
  %v346 = vadd.f32 0.0, %v345
  %v347 = vpop.f32.mrf.mxu0
  %v348 = vpop.f32.mrf.mxu0
  %v349 = vadd.f32 0.0, %v348
  %v350 = vpop.f32.mrf.mxu0
  %351 = vmatprep.mubr.bf16.mxu0 0
  %352 = vmatmul.mubr.bf16.gmra.mxu0 %v203
  %v353 = vpop.f32.mrf.mxu0
  %v354 = vadd.f32 0.0, %v353
  %v355 = vpop.f32.mrf.mxu0
  %v356 = vpop.f32.mrf.mxu0
  %v357 = vadd.f32 0.0, %v356
  %v358 = vpop.f32.mrf.mxu0
  %359 = vmatprep.mubr.bf16.mxu0 0
  %360 = vmatmul.mubr.bf16.gmra.mxu0 %v206
  %v361 = vpop.f32.mrf.mxu0
  %v362 = vadd.f32 0.0, %v361
  %v363 = vpop.f32.mrf.mxu0
  %v364 = vpop.f32.mrf.mxu0
  %v365 = vadd.f32 0.0, %v364
  %v366 = vpop.f32.mrf.mxu0
  %367 = vmatprep.mubr.bf16.mxu0 0
  %368 = vmatmul.mubr.bf16.gmra.mxu0 %v209
  %v369 = vpop.f32.mrf.mxu0
  %v370 = vadd.f32 0.0, %v369
  %v371 = vpop.f32.mrf.mxu0
  %v372 = vpop.f32.mrf.mxu0
  %v373 = vadd.f32 0.0, %v372
  %v374 = vpop.f32.mrf.mxu0
  %375 = vdwg.mxu0
  %376 = vst [vmem:[%s2] sm:$0xff] %v250
  %377 = vst [vmem:[%s2 + $0x8] sm:$0xff] %v253
  %378 = vst [vmem:[%s2 + $0x10] sm:$0xff] %v258
  %379 = vst [vmem:[%s2 + $0x18] sm:$0xff] %v261
  %380 = vst [vmem:[%s2 + $0x20] sm:$0xff] %v266
  %381 = vst [vmem:[%s2 + $0x28] sm:$0xff] %v269
  %382 = vst [vmem:[%s2 + $0x30] sm:$0xff] %v274
  %383 = vst [vmem:[%s2 + $0x38] sm:$0xff] %v277
  %384 = vst [vmem:[%s2 + $0x40] sm:$0xff] %v282
  %385 = vst [vmem:[%s2 + $0x48] sm:$0xff] %v285
  %386 = vst [vmem:[%s2 + $0x50] sm:$0xff] %v290
  %387 = vst [vmem:[%s2 + $0x58] sm:$0xff] %v293
  %388 = vst [vmem:[%s2 + $0x60] sm:$0xff] %v298
  %389 = vst [vmem:[%s2 + $0x68] sm:$0xff] %v301
  %390 = vst [vmem:[%s2 + $0x70] sm:$0xff] %v306
  %391 = vst [vmem:[%s2 + $0x78] sm:$0xff] %v309
  %392 = vst [vmem:[%s2 + $0x80] sm:$0xff] %v314
  %393 = vst [vmem:[%s2 + $0x88] sm:$0xff] %v317
  %394 = vst [vmem:[%s2 + $0x90] sm:$0xff] %v322
  %395 = vst [vmem:[%s2 + $0x98] sm:$0xff] %v325
  %396 = vst [vmem:[%s2 + $0xa0] sm:$0xff] %v330
  %397 = vst [vmem:[%s2 + $0xa8] sm:$0xff] %v333
  %398 = vst [vmem:[%s2 + $0xb0] sm:$0xff] %v338
  %399 = vst [vmem:[%s2 + $0xb8] sm:$0xff] %v341
  %400 = vst [vmem:[%s2 + $0xc0] sm:$0xff] %v346
  %401 = vst [vmem:[%s2 + $0xc8] sm:$0xff] %v349
  %402 = vst [vmem:[%s2 + $0xd0] sm:$0xff] %v354
  %403 = vst [vmem:[%s2 + $0xd8] sm:$0xff] %v357
  %404 = vst [vmem:[%s2 + $0xe0] sm:$0xff] %v362
  %405 = vst [vmem:[%s2 + $0xe8] sm:$0xff] %v365
  %406 = vst [vmem:[%s2 + $0xf0] sm:$0xff] %v370
  %407 = vst [vmem:[%s2 + $0xf8] sm:$0xff] %v373
  %v408 = vadd.f32 %v250, %v253
  %v409 = vadd.f32 %v408, %v258
  %v410 = vadd.f32 %v409, %v261
  %v411 = vadd.f32 %v410, %v266
  %v412 = vadd.f32 %v411, %v269
  %v413 = vadd.f32 %v412, %v274
  %v414 = vadd.f32 %v413, %v277
  %v415 = vadd.f32 %v414, %v282
  %v416 = vadd.f32 %v415, %v285
  %v417 = vadd.f32 %v416, %v290
  %v418 = vadd.f32 %v417, %v293
  %v419 = vadd.f32 %v418, %v298
  %v420 = vadd.f32 %v419, %v301
  %v421 = vadd.f32 %v420, %v306
  %v422 = vadd.f32 %v421, %v309
  %v423 = vadd.f32 %v422, %v314
  %v424 = vadd.f32 %v423, %v317
  %v425 = vadd.f32 %v424, %v322
  %v426 = vadd.f32 %v425, %v325
  %v427 = vadd.f32 %v426, %v330
  %v428 = vadd.f32 %v427, %v333
  %v429 = vadd.f32 %v428, %v338
  %v430 = vadd.f32 %v429, %v341
  %v431 = vadd.f32 %v430, %v346
  %v432 = vadd.f32 %v431, %v349
  %v433 = vadd.f32 %v432, %v354
  %v434 = vadd.f32 %v433, %v357
  %v435 = vadd.f32 %v434, %v362
  %v436 = vadd.f32 %v435, %v365
  %v437 = vadd.f32 %v436, %v370
  %v438 = vadd.f32 %v437, %v373
  %v439 = vrot.slane %v438, 4
  %v440 = vadd.f32 %v438, %v439
  %v441 = vrot.slane %v440, 2
  %v442 = vadd.f32 %v440, %v441
  %v443 = vrot.slane %v442, 1
  %v444 = vadd.f32 %v442, %v443
  %v445 = vmul.f32 %v250, %v250
  %v446 = vmul.f32 %v253, %v253
  %v447 = vmul.f32 %v258, %v258
  %v448 = vmul.f32 %v261, %v261
  %v449 = vmul.f32 %v266, %v266
  %v450 = vmul.f32 %v269, %v269
  %v451 = vmul.f32 %v274, %v274
  %v452 = vmul.f32 %v277, %v277
  %v453 = vmul.f32 %v282, %v282
  %v454 = vmul.f32 %v285, %v285
  %v455 = vmul.f32 %v290, %v290
  %v456 = vmul.f32 %v293, %v293
  %v457 = vmul.f32 %v298, %v298
  %v458 = vmul.f32 %v301, %v301
  %v459 = vmul.f32 %v306, %v306
  %v460 = vmul.f32 %v309, %v309
  %v461 = vmul.f32 %v314, %v314
  %v462 = vmul.f32 %v317, %v317
  %v463 = vmul.f32 %v322, %v322
  %v464 = vmul.f32 %v325, %v325
  %v465 = vmul.f32 %v330, %v330
  %v466 = vmul.f32 %v333, %v333
  %v467 = vmul.f32 %v338, %v338
  %v468 = vmul.f32 %v341, %v341
  %v469 = vmul.f32 %v346, %v346
  %v470 = vmul.f32 %v349, %v349
  %v471 = vmul.f32 %v354, %v354
  %v472 = vmul.f32 %v357, %v357
  %v473 = vmul.f32 %v362, %v362
  %v474 = vmul.f32 %v365, %v365
  %v475 = vmul.f32 %v370, %v370
  %v476 = vmul.f32 %v373, %v373
  %v477 = vadd.f32 %v445, %v446
  %v478 = vadd.f32 %v477, %v447
  %v479 = vadd.f32 %v478, %v448
  %v480 = vadd.f32 %v479, %v449
  %v481 = vadd.f32 %v480, %v450
  %v482 = vadd.f32 %v481, %v451
  %v483 = vadd.f32 %v482, %v452
  %v484 = vadd.f32 %v483, %v453
  %v485 = vadd.f32 %v484, %v454
  %v486 = vadd.f32 %v485, %v455
  %v487 = vadd.f32 %v486, %v456
  %v488 = vadd.f32 %v487, %v457
  %v489 = vadd.f32 %v488, %v458
  %v490 = vadd.f32 %v489, %v459
  %v491 = vadd.f32 %v490, %v460
  %v492 = vadd.f32 %v491, %v461
  %v493 = vadd.f32 %v492, %v462
  %v494 = vadd.f32 %v493, %v463
  %v495 = vadd.f32 %v494, %v464
  %v496 = vadd.f32 %v495, %v465
  %v497 = vadd.f32 %v496, %v466
  %v498 = vadd.f32 %v497, %v467
  %v499 = vadd.f32 %v498, %v468
  %v500 = vadd.f32 %v499, %v469
  %v501 = vadd.f32 %v500, %v470
  %v502 = vadd.f32 %v501, %v471
  %v503 = vadd.f32 %v502, %v472
  %v504 = vadd.f32 %v503, %v473
  %v505 = vadd.f32 %v504, %v474
  %v506 = vadd.f32 %v505, %v475
  %v507 = vadd.f32 %v506, %v476
  %v508 = vrot.slane %v507, 4
  %v509 = vadd.f32 %v507, %v508
  %v510 = vrot.slane %v509, 2
  %v511 = vadd.f32 %v509, %v510
  %v512 = vrot.slane %v511, 1
  %v513 = vadd.f32 %v511, %v512
  %v514 = vlaneseq
  %v515 = vshrl.u32 %v514, 7
  %vm516 = vcmp.eq.s32.totalorder %v515, 0
  %v517 = vsel %vm516, %v444, 0.0
  %vm518 = vcmp.eq.s32.totalorder %v515, 1
  %v519 = vsel %vm518, %v513, 0.0
  %v520 = vadd.f32 %v517, %v519
  %521 = vst [vmem:[%s3] sm:$0xff] %v520
  // Predicated region
  $region10: #{preact_block_forward.6} parent=0 // pred_check
    _
  $region11: #{preact_block_forward.6} parent=0 // pred_check_branch
    %523 = sbr.rel (0) target = $region13
  $region12: #{preact_block_forward.6} parent=0 // pred_region
    _
  $region13: #{preact_block_forward.6} parent=0 // pred_fallthru
    _
  // Predicated region
  $region14: #{preact_block_forward.6} parent=0 // pred_check
    _
  $region15: #{preact_block_forward.6} parent=0 // pred_check_branch
    %525 = sbr.rel (0) target = $region17
  $region16: #{preact_block_forward.6} parent=0 // pred_region
    _
  $region17: #{preact_block_forward.6} parent=0 // pred_fallthru
    _
  // Predicated region
  $region18: #{preact_block_forward.6} parent=0 // pred_check
    _
  $region19: #{preact_block_forward.6} parent=0 // pred_check_branch
    %527 = sbr.rel (0) target = $region21
  $region20: #{preact_block_forward.6} parent=0 // pred_region
    _
  $region21: #{preact_block_forward.6} parent=0 // pred_fallthru
    _
  // Predicated region
  $region22: #{preact_block_forward.6} parent=0 // pred_check
    _
  $region23: #{preact_block_forward.6} parent=0 // pred_check_branch
    %529 = sbr.rel (0) target = $region25
  $region24: #{preact_block_forward.6} parent=0 // pred_region
    _
  $region25: #{preact_block_forward.6} parent=0 // pred_fallthru
    _

// kernel: preact_block_forward.7
$region0: #{preact_block_forward.7}
  #allocation0 [shape = 'u32[]', space=smem, size = 0x4, offset = 0x4, fixed_abs, tag = 'smem constant byte address 0x4 - core index']
  #allocation1 [shape = 'u32[144,128]{1,0:T(1,128)}', space=vmem, size = 0x12000, scoped, tag = 'internal scratch']
  %s0 = inlined_call_operand.vmem [shape: f32[256,128], index: 0, kind: input, shape index: {}]
  %s1 = inlined_call_operand.vmem [shape: f32[1,128], index: 1, kind: input, shape index: {}]
  %s2 = inlined_call_operand.vmem [shape: f32[1,128], index: 2, kind: input, shape index: {}]
  %s3 = inlined_call_operand.vmem [shape: bf16[256,4], index: 3, kind: input, shape index: {}]
  %s4 = inlined_call_operand.vmem [shape: bf16[4,128], index: 4, kind: input, shape index: {}]
  %s5 = inlined_call_operand.vmem [shape: f32[256,128], index: 5, kind: output, shape index: {}]
  %s6 = sld [smem:[#allocation0]]
  $region30: #{preact_block_forward.7} parent=0
    _
  %s8 = ssub.s32 1, %s6
  %s9 = scalar_select 0, %s8, %s6
  // Predicated region
  $region2: #{preact_block_forward.7} parent=0 // pred_check
    _
  $region3: #{preact_block_forward.7} parent=0 // pred_check_branch
    %11 = sbr.rel (0) target = $region5
  $region4: #{preact_block_forward.7} parent=0 // pred_region
    _
  $region5: #{preact_block_forward.7} parent=0 // pred_fallthru
    _
  // Predicated region
  $region6: #{preact_block_forward.7} parent=0 // pred_check
    _
  $region7: #{preact_block_forward.7} parent=0 // pred_check_branch
    %13 = sbr.rel (0) target = $region9
  $region8: #{preact_block_forward.7} parent=0 // pred_region
    _
  $region9: #{preact_block_forward.7} parent=0 // pred_fallthru
    _
  // Predicated region
  $region10: #{preact_block_forward.7} parent=0 // pred_check
    _
  $region11: #{preact_block_forward.7} parent=0 // pred_check_branch
    %15 = sbr.rel (0) target = $region13
  $region12: #{preact_block_forward.7} parent=0 // pred_region
    _
  $region13: #{preact_block_forward.7} parent=0 // pred_fallthru
    _
  // Predicated region
  $region14: #{preact_block_forward.7} parent=0 // pred_check
    _
  $region15: #{preact_block_forward.7} parent=0 // pred_check_branch
    %17 = sbr.rel (0) target = $region17
  $region16: #{preact_block_forward.7} parent=0 // pred_region
    _
  $region17: #{preact_block_forward.7} parent=0 // pred_fallthru
    _
  // Predicated region
  $region18: #{preact_block_forward.7} parent=0 // pred_check
    _
  $region19: #{preact_block_forward.7} parent=0 // pred_check_branch
    %19 = sbr.rel (0) target = $region21
  $region20: #{preact_block_forward.7} parent=0 // pred_region
    _
  $region21: #{preact_block_forward.7} parent=0 // pred_fallthru
    _
  %v21 = vld [vmem:[%s0] sm:$0xff]
  %v22 = vld [vmem:[%s0 + $0x8] sm:$0xff]
  %v23 = vld [vmem:[%s0 + $0x10] sm:$0xff]
  %v24 = vld [vmem:[%s0 + $0x18] sm:$0xff]
  %v25 = vld [vmem:[%s0 + $0x20] sm:$0xff]
  %v26 = vld [vmem:[%s0 + $0x28] sm:$0xff]
  %v27 = vld [vmem:[%s0 + $0x30] sm:$0xff]
  %v28 = vld [vmem:[%s0 + $0x38] sm:$0xff]
  %v29 = vld [vmem:[%s0 + $0x40] sm:$0xff]
  %v30 = vld [vmem:[%s0 + $0x48] sm:$0xff]
  %v31 = vld [vmem:[%s0 + $0x50] sm:$0xff]
  %v32 = vld [vmem:[%s0 + $0x58] sm:$0xff]
  %v33 = vld [vmem:[%s0 + $0x60] sm:$0xff]
  %v34 = vld [vmem:[%s0 + $0x68] sm:$0xff]
  %v35 = vld [vmem:[%s0 + $0x70] sm:$0xff]
  %v36 = vld [vmem:[%s0 + $0x78] sm:$0xff]
  %v37 = vld [vmem:[%s0 + $0x80] sm:$0xff]
  %v38 = vld [vmem:[%s0 + $0x88] sm:$0xff]
  %v39 = vld [vmem:[%s0 + $0x90] sm:$0xff]
  %v40 = vld [vmem:[%s0 + $0x98] sm:$0xff]
  %v41 = vld [vmem:[%s0 + $0xa0] sm:$0xff]
  %v42 = vld [vmem:[%s0 + $0xa8] sm:$0xff]
  %v43 = vld [vmem:[%s0 + $0xb0] sm:$0xff]
  %v44 = vld [vmem:[%s0 + $0xb8] sm:$0xff]
  %v45 = vld [vmem:[%s0 + $0xc0] sm:$0xff]
  %v46 = vld [vmem:[%s0 + $0xc8] sm:$0xff]
  %v47 = vld [vmem:[%s0 + $0xd0] sm:$0xff]
  %v48 = vld [vmem:[%s0 + $0xd8] sm:$0xff]
  %v49 = vld [vmem:[%s0 + $0xe0] sm:$0xff]
  %v50 = vld [vmem:[%s0 + $0xe8] sm:$0xff]
  %v51 = vld [vmem:[%s0 + $0xf0] sm:$0xff]
  %v52 = vld [vmem:[%s0 + $0xf8] sm:$0xff]
  %v53 = vld [vmem:[%s1] sm:$0x1]
  %v55 = vlaneseq
  %v56 = vshrl.u32 %v55, 7
  %v57 = vsub.s32 0, %v56
  %v58 = vrot.slane %v53, %v57
  %v60 = vmul.f32 %v21, %v58
  %v61 = vmul.f32 %v22, %v58
  %v62 = vmul.f32 %v23, %v58
  %v63 = vmul.f32 %v24, %v58
  %v64 = vmul.f32 %v25, %v58
  %v65 = vmul.f32 %v26, %v58
  %v66 = vmul.f32 %v27, %v58
  %v67 = vmul.f32 %v28, %v58
  %v68 = vmul.f32 %v29, %v58
  %v69 = vmul.f32 %v30, %v58
  %v70 = vmul.f32 %v31, %v58
  %v71 = vmul.f32 %v32, %v58
  %v72 = vmul.f32 %v33, %v58
  %v73 = vmul.f32 %v34, %v58
  %v74 = vmul.f32 %v35, %v58
  %v75 = vmul.f32 %v36, %v58
  %v76 = vmul.f32 %v37, %v58
  %v77 = vmul.f32 %v38, %v58
  %v78 = vmul.f32 %v39, %v58
  %v79 = vmul.f32 %v40, %v58
  %v80 = vmul.f32 %v41, %v58
  %v81 = vmul.f32 %v42, %v58
  %v82 = vmul.f32 %v43, %v58
  %v83 = vmul.f32 %v44, %v58
  %v84 = vmul.f32 %v45, %v58
  %v85 = vmul.f32 %v46, %v58
  %v86 = vmul.f32 %v47, %v58
  %v87 = vmul.f32 %v48, %v58
  %v88 = vmul.f32 %v49, %v58
  %v89 = vmul.f32 %v50, %v58
  %v90 = vmul.f32 %v51, %v58
  %v91 = vmul.f32 %v52, %v58
  %v92 = vld [vmem:[%s2] sm:$0x1]
  %v94 = vlaneseq
  %v95 = vshrl.u32 %v94, 7
  %v96 = vsub.s32 0, %v95
  %v97 = vrot.slane %v92, %v96
  %v99 = vadd.f32 %v60, %v97
  %v100 = vadd.f32 %v61, %v97
  %v101 = vadd.f32 %v62, %v97
  %v102 = vadd.f32 %v63, %v97
  %v103 = vadd.f32 %v64, %v97
  %v104 = vadd.f32 %v65, %v97
  %v105 = vadd.f32 %v66, %v97
  %v106 = vadd.f32 %v67, %v97
  %v107 = vadd.f32 %v68, %v97
  %v108 = vadd.f32 %v69, %v97
  %v109 = vadd.f32 %v70, %v97
  %v110 = vadd.f32 %v71, %v97
  %v111 = vadd.f32 %v72, %v97
  %v112 = vadd.f32 %v73, %v97
  %v113 = vadd.f32 %v74, %v97
  %v114 = vadd.f32 %v75, %v97
  %v115 = vadd.f32 %v76, %v97
  %v116 = vadd.f32 %v77, %v97
  %v117 = vadd.f32 %v78, %v97
  %v118 = vadd.f32 %v79, %v97
  %v119 = vadd.f32 %v80, %v97
  %v120 = vadd.f32 %v81, %v97
  %v121 = vadd.f32 %v82, %v97
  %v122 = vadd.f32 %v83, %v97
  %v123 = vadd.f32 %v84, %v97
  %v124 = vadd.f32 %v85, %v97
  %v125 = vadd.f32 %v86, %v97
  %v126 = vadd.f32 %v87, %v97
  %v127 = vadd.f32 %v88, %v97
  %v128 = vadd.f32 %v89, %v97
  %v129 = vadd.f32 %v90, %v97
  %v130 = vadd.f32 %v91, %v97
  %v131 = vmax.f32 %v99, 0.0
  %v132 = vmax.f32 %v100, 0.0
  %v133 = vmax.f32 %v101, 0.0
  %v134 = vmax.f32 %v102, 0.0
  %v135 = vmax.f32 %v103, 0.0
  %v136 = vmax.f32 %v104, 0.0
  %v137 = vmax.f32 %v105, 0.0
  %v138 = vmax.f32 %v106, 0.0
  %v139 = vmax.f32 %v107, 0.0
  %v140 = vmax.f32 %v108, 0.0
  %v141 = vmax.f32 %v109, 0.0
  %v142 = vmax.f32 %v110, 0.0
  %v143 = vmax.f32 %v111, 0.0
  %v144 = vmax.f32 %v112, 0.0
  %v145 = vmax.f32 %v113, 0.0
  %v146 = vmax.f32 %v114, 0.0
  %v147 = vmax.f32 %v115, 0.0
  %v148 = vmax.f32 %v116, 0.0
  %v149 = vmax.f32 %v117, 0.0
  %v150 = vmax.f32 %v118, 0.0
  %v151 = vmax.f32 %v119, 0.0
  %v152 = vmax.f32 %v120, 0.0
  %v153 = vmax.f32 %v121, 0.0
  %v154 = vmax.f32 %v122, 0.0
  %v155 = vmax.f32 %v123, 0.0
  %v156 = vmax.f32 %v124, 0.0
  %v157 = vmax.f32 %v125, 0.0
  %v158 = vmax.f32 %v126, 0.0
  %v159 = vmax.f32 %v127, 0.0
  %v160 = vmax.f32 %v128, 0.0
  %v161 = vmax.f32 %v129, 0.0
  %v162 = vmax.f32 %v130, 0.0
  %v163 = vld [vmem:[%s3] sm:$0xf]
  %v164 = vld [vmem:[%s3 + $0x4] sm:$0xf]
  %v165 = vld [vmem:[%s3 + $0x8] sm:$0xf]
  %v166 = vld [vmem:[%s3 + $0xc] sm:$0xf]
  %v167 = vld [vmem:[%s3 + $0x10] sm:$0xf]
  %v168 = vld [vmem:[%s3 + $0x14] sm:$0xf]
  %v169 = vld [vmem:[%s3 + $0x18] sm:$0xf]
  %v170 = vld [vmem:[%s3 + $0x1c] sm:$0xf]
  %v171 = vld [vmem:[%s3 + $0x20] sm:$0xf]
  %v172 = vld [vmem:[%s3 + $0x24] sm:$0xf]
  %v173 = vld [vmem:[%s3 + $0x28] sm:$0xf]
  %v174 = vld [vmem:[%s3 + $0x2c] sm:$0xf]
  %v175 = vld [vmem:[%s3 + $0x30] sm:$0xf]
  %v176 = vld [vmem:[%s3 + $0x34] sm:$0xf]
  %v177 = vld [vmem:[%s3 + $0x38] sm:$0xf]
  %v178 = vld [vmem:[%s3 + $0x3c] sm:$0xf]
  %v179 = vld [vmem:[%s3 + $0x40] sm:$0xf]
  %v180 = vld [vmem:[%s3 + $0x44] sm:$0xf]
  %v181 = vld [vmem:[%s3 + $0x48] sm:$0xf]
  %v182 = vld [vmem:[%s3 + $0x4c] sm:$0xf]
  %v183 = vld [vmem:[%s3 + $0x50] sm:$0xf]
  %v184 = vld [vmem:[%s3 + $0x54] sm:$0xf]
  %v185 = vld [vmem:[%s3 + $0x58] sm:$0xf]
  %v186 = vld [vmem:[%s3 + $0x5c] sm:$0xf]
  %v187 = vld [vmem:[%s3 + $0x60] sm:$0xf]
  %v188 = vld [vmem:[%s3 + $0x64] sm:$0xf]
  %v189 = vld [vmem:[%s3 + $0x68] sm:$0xf]
  %v190 = vld [vmem:[%s3 + $0x6c] sm:$0xf]
  %v191 = vld [vmem:[%s3 + $0x70] sm:$0xf]
  %v192 = vld [vmem:[%s3 + $0x74] sm:$0xf]
  %v193 = vld [vmem:[%s3 + $0x78] sm:$0xf]
  %v194 = vld [vmem:[%s3 + $0x7c] sm:$0xf]
  %v195 = vld [vmem:[%s4] sm:$0x3]
  %v228 = vunpack.c.l.b16 %v163
  %v229 = vunpack.c.l.b16 %v164
  %v230 = vunpack.c.l.b16 %v165
  %v231 = vunpack.c.l.b16 %v166
  %v232 = vunpack.c.l.b16 %v167
  %v233 = vunpack.c.l.b16 %v168
  %v234 = vunpack.c.l.b16 %v169
  %v235 = vunpack.c.l.b16 %v170
  %v236 = vunpack.c.l.b16 %v171
  %v237 = vunpack.c.l.b16 %v172
  %v238 = vunpack.c.l.b16 %v173
  %v239 = vunpack.c.l.b16 %v174
  %v240 = vunpack.c.l.b16 %v175
  %v241 = vunpack.c.l.b16 %v176
  %v242 = vunpack.c.l.b16 %v177
  %v243 = vunpack.c.l.b16 %v178
  %v244 = vunpack.c.l.b16 %v179
  %v245 = vunpack.c.l.b16 %v180
  %v246 = vunpack.c.l.b16 %v181
  %v247 = vunpack.c.l.b16 %v182
  %v248 = vunpack.c.l.b16 %v183
  %v249 = vunpack.c.l.b16 %v184
  %v250 = vunpack.c.l.b16 %v185
  %v251 = vunpack.c.l.b16 %v186
  %v252 = vunpack.c.l.b16 %v187
  %v253 = vunpack.c.l.b16 %v188
  %v254 = vunpack.c.l.b16 %v189
  %v255 = vunpack.c.l.b16 %v190
  %v256 = vunpack.c.l.b16 %v191
  %v257 = vunpack.c.l.b16 %v192
  %v258 = vunpack.c.l.b16 %v193
  %v259 = vunpack.c.l.b16 %v194
  %v260 = vpack.c.b16 %v229, %v228
  %v261 = vpack.c.b16 %v231, %v230
  %v262 = vpack.c.b16 %v233, %v232
  %v263 = vpack.c.b16 %v235, %v234
  %v264 = vpack.c.b16 %v237, %v236
  %v265 = vpack.c.b16 %v239, %v238
  %v266 = vpack.c.b16 %v241, %v240
  %v267 = vpack.c.b16 %v243, %v242
  %v268 = vpack.c.b16 %v245, %v244
  %v269 = vpack.c.b16 %v247, %v246
  %v270 = vpack.c.b16 %v249, %v248
  %v271 = vpack.c.b16 %v251, %v250
  %v272 = vpack.c.b16 %v253, %v252
  %v273 = vpack.c.b16 %v255, %v254
  %v274 = vpack.c.b16 %v257, %v256
  %v275 = vpack.c.b16 %v259, %v258
  %vm276 = vcmask 31744
  %v278 = vsel %vm276, %v260, 0
  %v281 = vsel %vm276, %v261, 0
  %v284 = vsel %vm276, %v262, 0
  %v287 = vsel %vm276, %v263, 0
  %v290 = vsel %vm276, %v264, 0
  %v293 = vsel %vm276, %v265, 0
  %v296 = vsel %vm276, %v266, 0
  %v299 = vsel %vm276, %v267, 0
  %v302 = vsel %vm276, %v268, 0
  %v305 = vsel %vm276, %v269, 0
  %v308 = vsel %vm276, %v270, 0
  %v311 = vsel %vm276, %v271, 0
  %v314 = vsel %vm276, %v272, 0
  %v317 = vsel %vm276, %v273, 0
  %v320 = vsel %vm276, %v274, 0
  %v323 = vsel %vm276, %v275, 0
  %vm325 = vcmask 1041408
  %v327 = vsel %vm325, %v195, 0
  %329 = vmatprep.subr.bf16.mxu0 0
  %330 = vmatpush1.bf16.msra.mxu0 0
  %331 = vmatprep.subr.bf16.mxu0 0
  %332 = vmatpush1.bf16.msra.mxu0 0
  %333 = vmatprep.subr.bf16.mxu0 0
  %334 = vmatpush1.bf16.msra.mxu0 0
  %335 = vmatprep.subr.bf16.mxu0 0
  %336 = vmatpush1.bf16.msra.mxu0 0
  %337 = vmatprep.subr.bf16.mxu0 0
  %338 = vmatpush1.bf16.msra.mxu0 0
  %339 = vmatprep.subr.bf16.mxu0 0
  %340 = vmatpush1.bf16.msra.mxu0 0
  %341 = vmatprep.subr.bf16.mxu0 0
  %342 = vmatpush1.bf16.msra.mxu0 0
  %343 = vmatprep.subr.bf16.mxu0 0
  %344 = vmatpush1.bf16.msra.mxu0 %v327
  %345 = vmatprep.subr.bf16.mxu0 0
  %346 = vmatpush2.bf16.msra.mxu0 0
  %347 = vmatprep.subr.bf16.mxu0 0
  %348 = vmatpush2.bf16.msra.mxu0 0
  %349 = vmatprep.subr.bf16.mxu0 0
  %350 = vmatpush2.bf16.msra.mxu0 0
  %351 = vmatprep.subr.bf16.mxu0 0
  %352 = vmatpush2.bf16.msra.mxu0 0
  %353 = vmatprep.subr.bf16.mxu0 0
  %354 = vmatpush2.bf16.msra.mxu0 0
  %355 = vmatprep.subr.bf16.mxu0 0
  %356 = vmatpush2.bf16.msra.mxu0 0
  %357 = vmatprep.subr.bf16.mxu0 0
  %358 = vmatpush2.bf16.msra.mxu0 0
  %359 = vmatprep.subr.bf16.mxu0 0
  %360 = vmatpush2.bf16.msra.mxu0 0
  %361 = vmatprep.mubr.bf16.mxu0 0
  %362 = vmatmul.mubr.bf16.gmra.mxu0 %v278
  %v363 = vpop.f32.mrf.mxu0
  %v364 = vadd.f32 0.0, %v363
  %v365 = vpop.f32.mrf.mxu0
  %v366 = vpop.f32.mrf.mxu0
  %v367 = vadd.f32 0.0, %v366
  %v368 = vpop.f32.mrf.mxu0
  %369 = vmatprep.mubr.bf16.mxu0 0
  %370 = vmatmul.mubr.bf16.gmra.mxu0 %v281
  %v371 = vpop.f32.mrf.mxu0
  %v372 = vadd.f32 0.0, %v371
  %v373 = vpop.f32.mrf.mxu0
  %v374 = vpop.f32.mrf.mxu0
  %v375 = vadd.f32 0.0, %v374
  %v376 = vpop.f32.mrf.mxu0
  %377 = vmatprep.mubr.bf16.mxu0 0
  %378 = vmatmul.mubr.bf16.gmra.mxu0 %v284
  %v379 = vpop.f32.mrf.mxu0
  %v380 = vadd.f32 0.0, %v379
  %v381 = vpop.f32.mrf.mxu0
  %v382 = vpop.f32.mrf.mxu0
  %v383 = vadd.f32 0.0, %v382
  %v384 = vpop.f32.mrf.mxu0
  %385 = vmatprep.mubr.bf16.mxu0 0
  %386 = vmatmul.mubr.bf16.gmra.mxu0 %v287
  %v387 = vpop.f32.mrf.mxu0
  %v388 = vadd.f32 0.0, %v387
  %v389 = vpop.f32.mrf.mxu0
  %v390 = vpop.f32.mrf.mxu0
  %v391 = vadd.f32 0.0, %v390
  %v392 = vpop.f32.mrf.mxu0
  %393 = vmatprep.mubr.bf16.mxu0 0
  %394 = vmatmul.mubr.bf16.gmra.mxu0 %v290
  %v395 = vpop.f32.mrf.mxu0
  %v396 = vadd.f32 0.0, %v395
  %v397 = vpop.f32.mrf.mxu0
  %v398 = vpop.f32.mrf.mxu0
  %v399 = vadd.f32 0.0, %v398
  %v400 = vpop.f32.mrf.mxu0
  %401 = vmatprep.mubr.bf16.mxu0 0
  %402 = vmatmul.mubr.bf16.gmra.mxu0 %v293
  %v403 = vpop.f32.mrf.mxu0
  %v404 = vadd.f32 0.0, %v403
  %v405 = vpop.f32.mrf.mxu0
  %v406 = vpop.f32.mrf.mxu0
  %v407 = vadd.f32 0.0, %v406
  %v408 = vpop.f32.mrf.mxu0
  %409 = vmatprep.mubr.bf16.mxu0 0
  %410 = vmatmul.mubr.bf16.gmra.mxu0 %v296
  %v411 = vpop.f32.mrf.mxu0
  %v412 = vadd.f32 0.0, %v411
  %v413 = vpop.f32.mrf.mxu0
  %v414 = vpop.f32.mrf.mxu0
  %v415 = vadd.f32 0.0, %v414
  %v416 = vpop.f32.mrf.mxu0
  %417 = vmatprep.mubr.bf16.mxu0 0
  %418 = vmatmul.mubr.bf16.gmra.mxu0 %v299
  %v419 = vpop.f32.mrf.mxu0
  %v420 = vadd.f32 0.0, %v419
  %v421 = vpop.f32.mrf.mxu0
  %v422 = vpop.f32.mrf.mxu0
  %v423 = vadd.f32 0.0, %v422
  %v424 = vpop.f32.mrf.mxu0
  %425 = vmatprep.mubr.bf16.mxu0 0
  %426 = vmatmul.mubr.bf16.gmra.mxu0 %v302
  %v427 = vpop.f32.mrf.mxu0
  %v428 = vadd.f32 0.0, %v427
  %v429 = vpop.f32.mrf.mxu0
  %v430 = vpop.f32.mrf.mxu0
  %v431 = vadd.f32 0.0, %v430
  %v432 = vpop.f32.mrf.mxu0
  %433 = vmatprep.mubr.bf16.mxu0 0
  %434 = vmatmul.mubr.bf16.gmra.mxu0 %v305
  %v435 = vpop.f32.mrf.mxu0
  %v436 = vadd.f32 0.0, %v435
  %v437 = vpop.f32.mrf.mxu0
  %v438 = vpop.f32.mrf.mxu0
  %v439 = vadd.f32 0.0, %v438
  %v440 = vpop.f32.mrf.mxu0
  %441 = vmatprep.mubr.bf16.mxu0 0
  %442 = vmatmul.mubr.bf16.gmra.mxu0 %v308
  %v443 = vpop.f32.mrf.mxu0
  %v444 = vadd.f32 0.0, %v443
  %v445 = vpop.f32.mrf.mxu0
  %v446 = vpop.f32.mrf.mxu0
  %v447 = vadd.f32 0.0, %v446
  %v448 = vpop.f32.mrf.mxu0
  %449 = vmatprep.mubr.bf16.mxu0 0
  %450 = vmatmul.mubr.bf16.gmra.mxu0 %v311
  %v451 = vpop.f32.mrf.mxu0
  %v452 = vadd.f32 0.0, %v451
  %v453 = vpop.f32.mrf.mxu0
  %v454 = vpop.f32.mrf.mxu0
  %v455 = vadd.f32 0.0, %v454
  %v456 = vpop.f32.mrf.mxu0
  %457 = vmatprep.mubr.bf16.mxu0 0
  %458 = vmatmul.mubr.bf16.gmra.mxu0 %v314
  %v459 = vpop.f32.mrf.mxu0
  %v460 = vadd.f32 0.0, %v459
  %v461 = vpop.f32.mrf.mxu0
  %v462 = vpop.f32.mrf.mxu0
  %v463 = vadd.f32 0.0, %v462
  %v464 = vpop.f32.mrf.mxu0
  %465 = vmatprep.mubr.bf16.mxu0 0
  %466 = vmatmul.mubr.bf16.gmra.mxu0 %v317
  %v467 = vpop.f32.mrf.mxu0
  %v468 = vadd.f32 0.0, %v467
  %v469 = vpop.f32.mrf.mxu0
  %v470 = vpop.f32.mrf.mxu0
  %v471 = vadd.f32 0.0, %v470
  %v472 = vpop.f32.mrf.mxu0
  %473 = vmatprep.mubr.bf16.mxu0 0
  %474 = vmatmul.mubr.bf16.gmra.mxu0 %v320
  %v475 = vpop.f32.mrf.mxu0
  %v476 = vadd.f32 0.0, %v475
  %v477 = vpop.f32.mrf.mxu0
  %v478 = vpop.f32.mrf.mxu0
  %v479 = vadd.f32 0.0, %v478
  %v480 = vpop.f32.mrf.mxu0
  %481 = vmatprep.mubr.bf16.mxu0 0
  %482 = vmatmul.mubr.bf16.gmra.mxu0 %v323
  %v483 = vpop.f32.mrf.mxu0
  %v484 = vadd.f32 0.0, %v483
  %v485 = vpop.f32.mrf.mxu0
  %v486 = vpop.f32.mrf.mxu0
  %v487 = vadd.f32 0.0, %v486
  %v488 = vpop.f32.mrf.mxu0
  %489 = vdwg.mxu0
  %v490 = vadd.f32 %v131, %v364
  %v491 = vadd.f32 %v132, %v367
  %v492 = vadd.f32 %v133, %v372
  %v493 = vadd.f32 %v134, %v375
  %v494 = vadd.f32 %v135, %v380
  %v495 = vadd.f32 %v136, %v383
  %v496 = vadd.f32 %v137, %v388
  %v497 = vadd.f32 %v138, %v391
  %v498 = vadd.f32 %v139, %v396
  %v499 = vadd.f32 %v140, %v399
  %v500 = vadd.f32 %v141, %v404
  %v501 = vadd.f32 %v142, %v407
  %v502 = vadd.f32 %v143, %v412
  %v503 = vadd.f32 %v144, %v415
  %v504 = vadd.f32 %v145, %v420
  %v505 = vadd.f32 %v146, %v423
  %v506 = vadd.f32 %v147, %v428
  %v507 = vadd.f32 %v148, %v431
  %v508 = vadd.f32 %v149, %v436
  %v509 = vadd.f32 %v150, %v439
  %v510 = vadd.f32 %v151, %v444
  %v511 = vadd.f32 %v152, %v447
  %v512 = vadd.f32 %v153, %v452
  %v513 = vadd.f32 %v154, %v455
  %v514 = vadd.f32 %v155, %v460
  %v515 = vadd.f32 %v156, %v463
  %v516 = vadd.f32 %v157, %v468
  %v517 = vadd.f32 %v158, %v471
  %v518 = vadd.f32 %v159, %v476
  %v519 = vadd.f32 %v160, %v479
  %v520 = vadd.f32 %v161, %v484
  %v521 = vadd.f32 %v162, %v487
  %522 = vst [vmem:[%s5] sm:$0xff] %v490
  %523 = vst [vmem:[%s5 + $0x8] sm:$0xff] %v491
  %524 = vst [vmem:[%s5 + $0x10] sm:$0xff] %v492
  %525 = vst [vmem:[%s5 + $0x18] sm:$0xff] %v493
  %526 = vst [vmem:[%s5 + $0x20] sm:$0xff] %v494
  %527 = vst [vmem:[%s5 + $0x28] sm:$0xff] %v495
  %528 = vst [vmem:[%s5 + $0x30] sm:$0xff] %v496
  %529 = vst [vmem:[%s5 + $0x38] sm:$0xff] %v497
  %530 = vst [vmem:[%s5 + $0x40] sm:$0xff] %v498
  %531 = vst [vmem:[%s5 + $0x48] sm:$0xff] %v499
  %532 = vst [vmem:[%s5 + $0x50] sm:$0xff] %v500
  %533 = vst [vmem:[%s5 + $0x58] sm:$0xff] %v501
  %534 = vst [vmem:[%s5 + $0x60] sm:$0xff] %v502
  %535 = vst [vmem:[%s5 + $0x68] sm:$0xff] %v503
  %536 = vst [vmem:[%s5 + $0x70] sm:$0xff] %v504
  %537 = vst [vmem:[%s5 + $0x78] sm:$0xff] %v505
  %538 = vst [vmem:[%s5 + $0x80] sm:$0xff] %v506
  %539 = vst [vmem:[%s5 + $0x88] sm:$0xff] %v507
  %540 = vst [vmem:[%s5 + $0x90] sm:$0xff] %v508
  %541 = vst [vmem:[%s5 + $0x98] sm:$0xff] %v509
  %542 = vst [vmem:[%s5 + $0xa0] sm:$0xff] %v510
  %543 = vst [vmem:[%s5 + $0xa8] sm:$0xff] %v511
  %544 = vst [vmem:[%s5 + $0xb0] sm:$0xff] %v512
  %545 = vst [vmem:[%s5 + $0xb8] sm:$0xff] %v513
  %546 = vst [vmem:[%s5 + $0xc0] sm:$0xff] %v514
  %547 = vst [vmem:[%s5 + $0xc8] sm:$0xff] %v515
  %548 = vst [vmem:[%s5 + $0xd0] sm:$0xff] %v516
  %549 = vst [vmem:[%s5 + $0xd8] sm:$0xff] %v517
  %550 = vst [vmem:[%s5 + $0xe0] sm:$0xff] %v518
  %551 = vst [vmem:[%s5 + $0xe8] sm:$0xff] %v519
  %552 = vst [vmem:[%s5 + $0xf0] sm:$0xff] %v520
  %553 = vst [vmem:[%s5 + $0xf8] sm:$0xff] %v521
  // Predicated region
  $region22: #{preact_block_forward.7} parent=0 // pred_check
    _
  $region23: #{preact_block_forward.7} parent=0 // pred_check_branch
    %555 = sbr.rel (0) target = $region25
  $region24: #{preact_block_forward.7} parent=0 // pred_region
    _
  $region25: #{preact_block_forward.7} parent=0 // pred_fallthru
    _
  // Predicated region
  $region26: #{preact_block_forward.7} parent=0 // pred_check
    _
  $region27: #{preact_block_forward.7} parent=0 // pred_check_branch
    %557 = sbr.rel (0) target = $region29
  $region28: #{preact_block_forward.7} parent=0 // pred_region
    _
  $region29: #{preact_block_forward.7} parent=0 // pred_fallthru
    _

</llo_original>
